<compile_context>
chip_gen: v5e
topology: v5e:2x2
jax: 0.10.0
libtpu: 0.0.40
codegen_flags: <defaults>
</compile_context>

<pallas_src>
import functools

import jax
import jax.numpy as jnp
from jax.experimental import pallas as pl
from jax.experimental.pallas import tpu as pltpu


# ---------------------------------------------------------------------------
# Per-generation tile policy.
# ---------------------------------------------------------------------------
def _tile_policy():
    try:
        kind = jax.devices()[0].device_kind.lower()
    except Exception:
        kind = ""
    if "v7" in kind:
        # 64 MiB physical VMEM per TC, 2 TCs: keep tiles <= ~4 MiB and leave
        # >= 2 grid steps so "parallel" can shard across both TensorCores.
        return {"target_tile_bytes": 4 << 20, "min_grid_steps": 2,
                "vmem_limit": None}
    if "v6" in kind or "v5" in kind:
        # Single TC, 128 MiB VMEM: bigger single-step tiles amortize the
        # ~0.35 us per-grid-step overhead; raise the scoped VMEM limit so the
        # double-buffered in+out tiles fit.
        return {"target_tile_bytes": 8 << 20, "min_grid_steps": 1,
                "vmem_limit": 64 << 20}
    # Unknown generation: conservative defaults.
    return {"target_tile_bytes": 2 << 20, "min_grid_steps": 1,
            "vmem_limit": None}


def _choose_batch_tile(n, per_elem_bytes, target_tile_bytes, min_grid_steps):
    """Batch-tile size TB.  Prefers whole-batch tiles; on multi-TC chips keeps
    >= min_grid_steps steps (only when the per-step tile stays non-trivial)."""
    tb = max(1, min(n, target_tile_bytes // max(per_elem_bytes, 1)))
    if (min_grid_steps > 1 and n >= min_grid_steps
            and n * per_elem_bytes >= min_grid_steps * (512 << 10)):
        tb = min(tb, pl.cdiv(n, min_grid_steps))
    if tb >= n:
        return n                       # full first dim: (8,128) rule trivially holds
    if tb >= 8:
        return (tb // 8) * 8           # multiple of 8 -> flattened 2-D block is legal
    return tb                          # small tile: caller uses the 3-D block form


# ---------------------------------------------------------------------------
# Dense kernel: x (TB, C, H, W) -> o (TB, W*H*C) or (TB, W, H*C), lane-dense.
# ---------------------------------------------------------------------------
def _dense_kernel(x_ref, o_ref):
    x = x_ref[...]
    tb, c, h, w = x.shape
    if c == 1:
        # Fast path: pure (H, W) -> (W, H) transpose, no channel interleave.
        t = jnp.swapaxes(x.reshape(tb, h, w), 1, 2)     # (TB, W, H)
    else:
        t = jnp.transpose(x, (0, 3, 2, 1))              # (TB, W, H, C)
    o_ref[...] = t.reshape(o_ref.shape)                  # dense, unmasked stores


def _tc_forward_dense(x, tb, flatten_2d, vmem_limit):
    n, c, h, w = x.shape
    cost = pl.CostEstimate(flops=0, transcendentals=0,
                           bytes_accessed=2 * n * c * h * w * x.dtype.itemsize)
    if flatten_2d:
        out_shape = jax.ShapeDtypeStruct((n, w * h * c), x.dtype)
        out_spec = pl.BlockSpec((tb, w * h * c), lambda i: (i, 0))
    else:
        out_shape = jax.ShapeDtypeStruct((n, w, h * c), x.dtype)
        out_spec = pl.BlockSpec((tb, w, h * c), lambda i: (i, 0, 0))
    out = pl.pallas_call(
        _dense_kernel,
        out_shape=out_shape,
        grid_spec=pltpu.PrefetchScalarGridSpec(
            num_scalar_prefetch=0,
            grid=(pl.cdiv(n, tb),),
            in_specs=[pl.BlockSpec((tb, c, h, w), lambda i: (i, 0, 0, 0))],
            out_specs=out_spec,
        ),
        compiler_params=pltpu.CompilerParams(
            dimension_semantics=("parallel",),
            vmem_limit_bytes=vmem_limit,
        ),
        cost_estimate=cost,
    )(x)
    # Free metadata reshape back to (N, W, H, C).
    return out.reshape(n, w, h, c)


# ---------------------------------------------------------------------------
# Fallback kernel (4-D output block, known-good lowering).
# ---------------------------------------------------------------------------
def _basic_kernel(x_ref, o_ref):
    o_ref[...] = jnp.transpose(x_ref[...], (0, 3, 2, 1))


def _tc_forward_basic(x, tb):
    n, c, h, w = x.shape
    cost = pl.CostEstimate(flops=0, transcendentals=0,
                           bytes_accessed=2 * n * c * h * w * x.dtype.itemsize)
    return pl.pallas_call(
        _basic_kernel,
        out_shape=jax.ShapeDtypeStruct((n, w, h, c), x.dtype),
        grid_spec=pltpu.PrefetchScalarGridSpec(
            num_scalar_prefetch=0,
            grid=(pl.cdiv(n, tb),),
            in_specs=[pl.BlockSpec((tb, c, h, w), lambda i: (i, 0, 0, 0))],
            out_specs=pl.BlockSpec((tb, w, h, c), lambda i: (i, 0, 0, 0)),
        ),
        compiler_params=pltpu.CompilerParams(dimension_semantics=("parallel",)),
        cost_estimate=cost,
    )(x)


# ---------------------------------------------------------------------------
# Build-time (cached) kernel selection: no per-call sync, no runtime except.
# ---------------------------------------------------------------------------
@functools.lru_cache(maxsize=None)
def _build_tc_forward(shape, dtype_name):
    n, c, h, w = shape
    dtype = jnp.dtype(dtype_name)
    policy = _tile_policy()
    per_elem_bytes = c * h * w * dtype.itemsize
    tb = _choose_batch_tile(n, per_elem_bytes,
                            policy["target_tile_bytes"],
                            policy["min_grid_steps"])
    flatten_2d = (tb == n) or (tb % 8 == 0)
    dense = jax.jit(functools.partial(_tc_forward_dense, tb=tb,
                                      flatten_2d=flatten_2d,
                                      vmem_limit=policy["vmem_limit"]))
    try:
        # One-time AOT lowering probe (runs Pallas -> Mosaic lowering); cached
        # per (shape, dtype) so the runtime path never syncs or re-checks.
        dense.lower(jax.ShapeDtypeStruct(shape, dtype))
        return dense
    except Exception:
        return jax.jit(functools.partial(_tc_forward_basic, tb=tb))


def tc_forward(x):
    """Pallas implementation of TC.forward: swap dims 1 and 3 of an NCHW tensor."""
    fn = _build_tc_forward(tuple(x.shape), str(jnp.dtype(x.dtype)))
    return fn(x)


if __name__ == "__main__":
    key = jax.random.PRNGKey(0)

    # Small NCHW input consistent with the module's forward (any 4-D tensor).
    x = jax.random.normal(key, (2, 4, 16, 16), dtype=jnp.float32)
    out = jax.block_until_ready(tc_forward(x))
    ref = jnp.transpose(x, (0, 3, 2, 1))
    assert out.shape == ref.shape, (out.shape, ref.shape)
    assert jnp.array_equal(out, ref), "mismatch vs reference transpose"

    # Extra coverage: TCResNet-style MFCC input (C == 1, unaligned W) and a
    # larger batch exercising the batched grid.
    for shape in [(4, 1, 40, 101), (8, 4, 16, 16)]:
        xi = jax.random.normal(jax.random.PRNGKey(1), shape, dtype=jnp.float32)
        oi = jax.block_until_ready(tc_forward(xi))
        ri = jnp.transpose(xi, (0, 3, 2, 1))
        assert oi.shape == ri.shape, (shape, oi.shape, ri.shape)
        assert jnp.array_equal(oi, ri), f"mismatch vs reference transpose for {shape}"

    print("KERNEL_OK")
</pallas_src>

<mosaic_0001>
module attributes {stable_mosaic.version = 11 : i64} {
  func.func @_basic_kernel(%arg0: i32, %arg1: memref<2x4x16x16xf32, #tpu.memory_space<vmem>>, %arg2: memref<2x16x16x4xf32, #tpu.memory_space<vmem>>) attributes {dimension_semantics = [#tpu.dimension_semantics<parallel>], iteration_bounds = array<i64: 1>, scalar_prefetch = 0 : i64, scratch_operands = 0 : i64, tpu.core_type = #tpu.core_type<tc>, window_params = [{transform_indices = @transform_0, window_bounds = array<i64: 2, 4, 16, 16>}, {transform_indices = @transform_1, window_bounds = array<i64: 2, 16, 16, 4>}]} {
    %c0 = arith.constant 0 : index
    %c0_0 = arith.constant 0 : index
    %c0_1 = arith.constant 0 : index
    %c0_2 = arith.constant 0 : index
    %0 = vector.load %arg1[%c0, %c0_0, %c0_1, %c0_2] : memref<2x4x16x16xf32, #tpu.memory_space<vmem>>, vector<2x4x16x16xf32>
    %1 = tpu.transpose %0, [0, 3, 2, 1] : vector<2x4x16x16xf32> -> vector<2x16x16x4xf32>
    %c0_3 = arith.constant 0 : index
    %c0_4 = arith.constant 0 : index
    %c0_5 = arith.constant 0 : index
    %c0_6 = arith.constant 0 : index
    %2 = vector.load %arg2[%c0_3, %c0_4, %c0_5, %c0_6] : memref<2x16x16x4xf32, #tpu.memory_space<vmem>>, vector<2x16x16x4xf32>
    tpu.vector_store %arg2[%c0_3, %c0_4, %c0_5, %c0_6], %1 {strides = array<i32>} : memref<2x16x16x4xf32, #tpu.memory_space<vmem>>, vector<2x16x16x4xf32>,
    return
  }
  func.func @transform_0(%arg0: i32) -> (i32, i32, i32, i32) {
    %c0_i32 = arith.constant 0 : i32
    %c0_i32_0 = arith.constant 0 : i32
    %c0_i32_1 = arith.constant 0 : i32
    %c0_i32_2 = arith.constant 0 : i32
    return %arg0, %c0_i32, %c0_i32_0, %c0_i32_1 : i32, i32, i32, i32
  }
  func.func @transform_1(%arg0: i32) -> (i32, i32, i32, i32) {
    %c0_i32 = arith.constant 0 : i32
    %c0_i32_0 = arith.constant 0 : i32
    %c0_i32_1 = arith.constant 0 : i32
    %c0_i32_2 = arith.constant 0 : i32
    return %arg0, %c0_i32, %c0_i32_0, %c0_i32_1 : i32, i32, i32, i32
  }
}

</mosaic_0001>

<llo_original>
// kernel: _tc_forward_basic.1
$region0: #{_tc_forward_basic.1}
  #allocation0 [shape = 'u32[]', space=smem, size = 0x4, offset = 0x4, fixed_abs, tag = 'smem constant byte address 0x4 - core index']
  #allocation1 [shape = 'u32[72,128]{1,0:T(1,128)}', space=vmem, size = 0x9000, scoped, tag = 'internal scratch']
  %s0 = inlined_call_operand.hbm [shape: f32[2,4,16,16], index: 0, kind: input, shape index: {}]
  %s1 = inlined_call_operand.vmem [shape: f32[2,16,16,4], index: 1, kind: output, shape index: {}]
  %s2 = sld [smem:[#allocation0]]
  $region18: #{_tc_forward_basic.1} parent=0
    _
  %s4 = ssub.s32 1, %s2
  %s5 = scalar_select 0, %s4, %s2
  $region1: #{_tc_forward_basic.1} parent=0
    #allocation2 [shape = 'u8[65536]{0}', space=vmem, size = 0x10000, scoped, tag = 'input window, operand 0, single buffered']
    #allocation3 [shape = 's32[1]{0}', space=sflag, size = 0x4, scoped, tag = 'scoped memory for _tc_forward_basic.1']
    %6 = vsyncpa [#allocation3], 0
    // Predicated region
    $region2: #{_tc_forward_basic.1} parent=1 // pred_check
      _
    $region3: #{_tc_forward_basic.1} parent=1 // pred_check_branch
      %8 = sbr.rel (0) target = $region5
    $region4: #{_tc_forward_basic.1} parent=1 // pred_region
      %10 = vsyncadd [#allocation3], 0
      %s11 = sshll.u32 %s0, 4
      %s12 = int_to_ptr.hbm [resolvable:$true] %s11
      %s13 = sshll.u32 [#allocation2], 4
      %s14 = int_to_ptr.vmem [resolvable:$true] %s13
      %19 = dma.hbm_to_vmem [thread:$0]  %s12, 2048, %s14, [#allocation3], 128, 128, 8
    $region5: #{_tc_forward_basic.1} parent=1 // pred_fallthru
      _
    // Predicated region
    $region6: #{_tc_forward_basic.1} parent=1 // pred_check
      _
    $region7: #{_tc_forward_basic.1} parent=1 // pred_check_branch
      %21 = sbr.rel (0) target = $region9
    $region8: #{_tc_forward_basic.1} parent=1 // pred_region
      %23 = dma.done [#allocation3], 2048
    $region9: #{_tc_forward_basic.1} parent=1 // pred_fallthru
      _
    %v24 = vld [vmem:[#allocation2] sm:$0xff]
    %v25 = vld [vmem:[#allocation2 + $0x8] sm:$0xff]
    %v26 = vld [vmem:[#allocation2 + $0x10] sm:$0xff]
    %v27 = vld [vmem:[#allocation2 + $0x18] sm:$0xff]
    %v28 = vld [vmem:[#allocation2 + $0x20] sm:$0xff]
    %v29 = vld [vmem:[#allocation2 + $0x28] sm:$0xff]
    %v30 = vld [vmem:[#allocation2 + $0x30] sm:$0xff]
    %v31 = vld [vmem:[#allocation2 + $0x38] sm:$0xff]
    %v32 = vld [vmem:[#allocation2 + $0x40] sm:$0xff]
    %v33 = vld [vmem:[#allocation2 + $0x48] sm:$0xff]
    %v34 = vld [vmem:[#allocation2 + $0x50] sm:$0xff]
    %v35 = vld [vmem:[#allocation2 + $0x58] sm:$0xff]
    %v36 = vld [vmem:[#allocation2 + $0x60] sm:$0xff]
    %v37 = vld [vmem:[#allocation2 + $0x68] sm:$0xff]
    %v38 = vld [vmem:[#allocation2 + $0x70] sm:$0xff]
    %v39 = vld [vmem:[#allocation2 + $0x78] sm:$0xff]
    %40 = vxpose.xlu0.b32.start [1/16] %v24, 128
    %41 = vxpose.xlu0.b32.cont [2/16] %v25, 128
    %42 = vxpose.xlu0.b32.cont [3/16] 0.0, 128
    %43 = vxpose.xlu0.b32.cont [4/16] 0.0, 128
    %44 = vxpose.xlu0.b32.cont [5/16] 0.0, 128
    %45 = vxpose.xlu0.b32.cont [6/16] 0.0, 128
    %46 = vxpose.xlu0.b32.cont [7/16] 0.0, 128
    %47 = vxpose.xlu0.b32.cont [8/16] 0.0, 128
    %48 = vxpose.xlu0.b32.cont [9/16] 0.0, 128
    %49 = vxpose.xlu0.b32.cont [10/16] 0.0, 128
    %50 = vxpose.xlu0.b32.cont [11/16] 0.0, 128
    %51 = vxpose.xlu0.b32.cont [12/16] 0.0, 128
    %52 = vxpose.xlu0.b32.cont [13/16] 0.0, 128
    %53 = vxpose.xlu0.b32.cont [14/16] 0.0, 128
    %54 = vxpose.xlu0.b32.cont [15/16] 0.0, 128
    %55 = vxpose.xlu0.b32.end [16/16] 0.0, 128
    %v56 = vpop.trf.xlu0
    %v57 = vpop.trf.xlu0
    %v58 = vpop.trf.xlu0
    %v59 = vpop.trf.xlu0
    %v60 = vpop.trf.xlu0
    %v61 = vpop.trf.xlu0
    %v62 = vpop.trf.xlu0
    %v63 = vpop.trf.xlu0
    %v64 = vpop.trf.xlu0
    %v65 = vpop.trf.xlu0
    %v66 = vpop.trf.xlu0
    %v67 = vpop.trf.xlu0
    %v68 = vpop.trf.xlu0
    %v69 = vpop.trf.xlu0
    %v70 = vpop.trf.xlu0
    %v71 = vpop.trf.xlu0
    %72 = vxpose.xlu0.b32.start [1/16] %v26, 128
    %73 = vxpose.xlu0.b32.cont [2/16] %v27, 128
    %74 = vxpose.xlu0.b32.cont [3/16] 0.0, 128
    %75 = vxpose.xlu0.b32.cont [4/16] 0.0, 128
    %76 = vxpose.xlu0.b32.cont [5/16] 0.0, 128
    %77 = vxpose.xlu0.b32.cont [6/16] 0.0, 128
    %78 = vxpose.xlu0.b32.cont [7/16] 0.0, 128
    %79 = vxpose.xlu0.b32.cont [8/16] 0.0, 128
    %80 = vxpose.xlu0.b32.cont [9/16] 0.0, 128
    %81 = vxpose.xlu0.b32.cont [10/16] 0.0, 128
    %82 = vxpose.xlu0.b32.cont [11/16] 0.0, 128
    %83 = vxpose.xlu0.b32.cont [12/16] 0.0, 128
    %84 = vxpose.xlu0.b32.cont [13/16] 0.0, 128
    %85 = vxpose.xlu0.b32.cont [14/16] 0.0, 128
    %86 = vxpose.xlu0.b32.cont [15/16] 0.0, 128
    %87 = vxpose.xlu0.b32.end [16/16] 0.0, 128
    %v88 = vpop.trf.xlu0
    %v89 = vpop.trf.xlu0
    %v90 = vpop.trf.xlu0
    %v91 = vpop.trf.xlu0
    %v92 = vpop.trf.xlu0
    %v93 = vpop.trf.xlu0
    %v94 = vpop.trf.xlu0
    %v95 = vpop.trf.xlu0
    %v96 = vpop.trf.xlu0
    %v97 = vpop.trf.xlu0
    %v98 = vpop.trf.xlu0
    %v99 = vpop.trf.xlu0
    %v100 = vpop.trf.xlu0
    %v101 = vpop.trf.xlu0
    %v102 = vpop.trf.xlu0
    %v103 = vpop.trf.xlu0
    %104 = vxpose.xlu0.b32.start [1/16] %v28, 128
    %105 = vxpose.xlu0.b32.cont [2/16] %v29, 128
    %106 = vxpose.xlu0.b32.cont [3/16] 0.0, 128
    %107 = vxpose.xlu0.b32.cont [4/16] 0.0, 128
    %108 = vxpose.xlu0.b32.cont [5/16] 0.0, 128
    %109 = vxpose.xlu0.b32.cont [6/16] 0.0, 128
    %110 = vxpose.xlu0.b32.cont [7/16] 0.0, 128
    %111 = vxpose.xlu0.b32.cont [8/16] 0.0, 128
    %112 = vxpose.xlu0.b32.cont [9/16] 0.0, 128
    %113 = vxpose.xlu0.b32.cont [10/16] 0.0, 128
    %114 = vxpose.xlu0.b32.cont [11/16] 0.0, 128
    %115 = vxpose.xlu0.b32.cont [12/16] 0.0, 128
    %116 = vxpose.xlu0.b32.cont [13/16] 0.0, 128
    %117 = vxpose.xlu0.b32.cont [14/16] 0.0, 128
    %118 = vxpose.xlu0.b32.cont [15/16] 0.0, 128
    %119 = vxpose.xlu0.b32.end [16/16] 0.0, 128
    %v120 = vpop.trf.xlu0
    %v121 = vpop.trf.xlu0
    %v122 = vpop.trf.xlu0
    %v123 = vpop.trf.xlu0
    %v124 = vpop.trf.xlu0
    %v125 = vpop.trf.xlu0
    %v126 = vpop.trf.xlu0
    %v127 = vpop.trf.xlu0
    %v128 = vpop.trf.xlu0
    %v129 = vpop.trf.xlu0
    %v130 = vpop.trf.xlu0
    %v131 = vpop.trf.xlu0
    %v132 = vpop.trf.xlu0
    %v133 = vpop.trf.xlu0
    %v134 = vpop.trf.xlu0
    %v135 = vpop.trf.xlu0
    %136 = vxpose.xlu0.b32.start [1/16] %v30, 128
    %137 = vxpose.xlu0.b32.cont [2/16] %v31, 128
    %138 = vxpose.xlu0.b32.cont [3/16] 0.0, 128
    %139 = vxpose.xlu0.b32.cont [4/16] 0.0, 128
    %140 = vxpose.xlu0.b32.cont [5/16] 0.0, 128
    %141 = vxpose.xlu0.b32.cont [6/16] 0.0, 128
    %142 = vxpose.xlu0.b32.cont [7/16] 0.0, 128
    %143 = vxpose.xlu0.b32.cont [8/16] 0.0, 128
    %144 = vxpose.xlu0.b32.cont [9/16] 0.0, 128
    %145 = vxpose.xlu0.b32.cont [10/16] 0.0, 128
    %146 = vxpose.xlu0.b32.cont [11/16] 0.0, 128
    %147 = vxpose.xlu0.b32.cont [12/16] 0.0, 128
    %148 = vxpose.xlu0.b32.cont [13/16] 0.0, 128
    %149 = vxpose.xlu0.b32.cont [14/16] 0.0, 128
    %150 = vxpose.xlu0.b32.cont [15/16] 0.0, 128
    %151 = vxpose.xlu0.b32.end [16/16] 0.0, 128
    %v152 = vpop.trf.xlu0
    %v153 = vpop.trf.xlu0
    %v154 = vpop.trf.xlu0
    %v155 = vpop.trf.xlu0
    %v156 = vpop.trf.xlu0
    %v157 = vpop.trf.xlu0
    %v158 = vpop.trf.xlu0
    %v159 = vpop.trf.xlu0
    %v160 = vpop.trf.xlu0
    %v161 = vpop.trf.xlu0
    %v162 = vpop.trf.xlu0
    %v163 = vpop.trf.xlu0
    %v164 = vpop.trf.xlu0
    %v165 = vpop.trf.xlu0
    %v166 = vpop.trf.xlu0
    %v167 = vpop.trf.xlu0
    %168 = vxpose.xlu0.b32.start [1/16] %v32, 128
    %169 = vxpose.xlu0.b32.cont [2/16] %v33, 128
    %170 = vxpose.xlu0.b32.cont [3/16] 0.0, 128
    %171 = vxpose.xlu0.b32.cont [4/16] 0.0, 128
    %172 = vxpose.xlu0.b32.cont [5/16] 0.0, 128
    %173 = vxpose.xlu0.b32.cont [6/16] 0.0, 128
    %174 = vxpose.xlu0.b32.cont [7/16] 0.0, 128
    %175 = vxpose.xlu0.b32.cont [8/16] 0.0, 128
    %176 = vxpose.xlu0.b32.cont [9/16] 0.0, 128
    %177 = vxpose.xlu0.b32.cont [10/16] 0.0, 128
    %178 = vxpose.xlu0.b32.cont [11/16] 0.0, 128
    %179 = vxpose.xlu0.b32.cont [12/16] 0.0, 128
    %180 = vxpose.xlu0.b32.cont [13/16] 0.0, 128
    %181 = vxpose.xlu0.b32.cont [14/16] 0.0, 128
    %182 = vxpose.xlu0.b32.cont [15/16] 0.0, 128
    %183 = vxpose.xlu0.b32.end [16/16] 0.0, 128
    %v184 = vpop.trf.xlu0
    %v185 = vpop.trf.xlu0
    %v186 = vpop.trf.xlu0
    %v187 = vpop.trf.xlu0
    %v188 = vpop.trf.xlu0
    %v189 = vpop.trf.xlu0
    %v190 = vpop.trf.xlu0
    %v191 = vpop.trf.xlu0
    %v192 = vpop.trf.xlu0
    %v193 = vpop.trf.xlu0
    %v194 = vpop.trf.xlu0
    %v195 = vpop.trf.xlu0
    %v196 = vpop.trf.xlu0
    %v197 = vpop.trf.xlu0
    %v198 = vpop.trf.xlu0
    %v199 = vpop.trf.xlu0
    %200 = vxpose.xlu0.b32.start [1/16] %v34, 128
    %201 = vxpose.xlu0.b32.cont [2/16] %v35, 128
    %202 = vxpose.xlu0.b32.cont [3/16] 0.0, 128
    %203 = vxpose.xlu0.b32.cont [4/16] 0.0, 128
    %204 = vxpose.xlu0.b32.cont [5/16] 0.0, 128
    %205 = vxpose.xlu0.b32.cont [6/16] 0.0, 128
    %206 = vxpose.xlu0.b32.cont [7/16] 0.0, 128
    %207 = vxpose.xlu0.b32.cont [8/16] 0.0, 128
    %208 = vxpose.xlu0.b32.cont [9/16] 0.0, 128
    %209 = vxpose.xlu0.b32.cont [10/16] 0.0, 128
    %210 = vxpose.xlu0.b32.cont [11/16] 0.0, 128
    %211 = vxpose.xlu0.b32.cont [12/16] 0.0, 128
    %212 = vxpose.xlu0.b32.cont [13/16] 0.0, 128
    %213 = vxpose.xlu0.b32.cont [14/16] 0.0, 128
    %214 = vxpose.xlu0.b32.cont [15/16] 0.0, 128
    %215 = vxpose.xlu0.b32.end [16/16] 0.0, 128
    %v216 = vpop.trf.xlu0
    %v217 = vpop.trf.xlu0
    %v218 = vpop.trf.xlu0
    %v219 = vpop.trf.xlu0
    %v220 = vpop.trf.xlu0
    %v221 = vpop.trf.xlu0
    %v222 = vpop.trf.xlu0
    %v223 = vpop.trf.xlu0
    %v224 = vpop.trf.xlu0
    %v225 = vpop.trf.xlu0
    %v226 = vpop.trf.xlu0
    %v227 = vpop.trf.xlu0
    %v228 = vpop.trf.xlu0
    %v229 = vpop.trf.xlu0
    %v230 = vpop.trf.xlu0
    %v231 = vpop.trf.xlu0
    %232 = vxpose.xlu0.b32.start [1/16] %v36, 128
    %233 = vxpose.xlu0.b32.cont [2/16] %v37, 128
    %234 = vxpose.xlu0.b32.cont [3/16] 0.0, 128
    %235 = vxpose.xlu0.b32.cont [4/16] 0.0, 128
    %236 = vxpose.xlu0.b32.cont [5/16] 0.0, 128
    %237 = vxpose.xlu0.b32.cont [6/16] 0.0, 128
    %238 = vxpose.xlu0.b32.cont [7/16] 0.0, 128
    %239 = vxpose.xlu0.b32.cont [8/16] 0.0, 128
    %240 = vxpose.xlu0.b32.cont [9/16] 0.0, 128
    %241 = vxpose.xlu0.b32.cont [10/16] 0.0, 128
    %242 = vxpose.xlu0.b32.cont [11/16] 0.0, 128
    %243 = vxpose.xlu0.b32.cont [12/16] 0.0, 128
    %244 = vxpose.xlu0.b32.cont [13/16] 0.0, 128
    %245 = vxpose.xlu0.b32.cont [14/16] 0.0, 128
    %246 = vxpose.xlu0.b32.cont [15/16] 0.0, 128
    %247 = vxpose.xlu0.b32.end [16/16] 0.0, 128
    %v248 = vpop.trf.xlu0
    %v249 = vpop.trf.xlu0
    %v250 = vpop.trf.xlu0
    %v251 = vpop.trf.xlu0
    %v252 = vpop.trf.xlu0
    %v253 = vpop.trf.xlu0
    %v254 = vpop.trf.xlu0
    %v255 = vpop.trf.xlu0
    %v256 = vpop.trf.xlu0
    %v257 = vpop.trf.xlu0
    %v258 = vpop.trf.xlu0
    %v259 = vpop.trf.xlu0
    %v260 = vpop.trf.xlu0
    %v261 = vpop.trf.xlu0
    %v262 = vpop.trf.xlu0
    %v263 = vpop.trf.xlu0
    %264 = vxpose.xlu0.b32.start [1/16] %v38, 128
    %265 = vxpose.xlu0.b32.cont [2/16] %v39, 128
    %266 = vxpose.xlu0.b32.cont [3/16] 0.0, 128
    %267 = vxpose.xlu0.b32.cont [4/16] 0.0, 128
    %268 = vxpose.xlu0.b32.cont [5/16] 0.0, 128
    %269 = vxpose.xlu0.b32.cont [6/16] 0.0, 128
    %270 = vxpose.xlu0.b32.cont [7/16] 0.0, 128
    %271 = vxpose.xlu0.b32.cont [8/16] 0.0, 128
    %272 = vxpose.xlu0.b32.cont [9/16] 0.0, 128
    %273 = vxpose.xlu0.b32.cont [10/16] 0.0, 128
    %274 = vxpose.xlu0.b32.cont [11/16] 0.0, 128
    %275 = vxpose.xlu0.b32.cont [12/16] 0.0, 128
    %276 = vxpose.xlu0.b32.cont [13/16] 0.0, 128
    %277 = vxpose.xlu0.b32.cont [14/16] 0.0, 128
    %278 = vxpose.xlu0.b32.cont [15/16] 0.0, 128
    %279 = vxpose.xlu0.b32.end [16/16] 0.0, 128
    %v280 = vpop.trf.xlu0
    %v281 = vpop.trf.xlu0
    %v282 = vpop.trf.xlu0
    %v283 = vpop.trf.xlu0
    %v284 = vpop.trf.xlu0
    %v285 = vpop.trf.xlu0
    %v286 = vpop.trf.xlu0
    %v287 = vpop.trf.xlu0
    %v288 = vpop.trf.xlu0
    %v289 = vpop.trf.xlu0
    %v290 = vpop.trf.xlu0
    %v291 = vpop.trf.xlu0
    %v292 = vpop.trf.xlu0
    %v293 = vpop.trf.xlu0
    %v294 = vpop.trf.xlu0
    %v295 = vpop.trf.xlu0
    %v296 = vrot.slane %v120, 4
    %vm297 = vcmask 1047556
    %v298 = vsel %vm297, %v296, %v56
    %v299 = vrot.slane %v56, 4
    %v300 = vsel %vm297, %v120, %v299
    %v302 = vunpack.c.l.s4 1983009808
    %v303 = vunpack.c.0.s8 %v302
    %v304 = vperm.slane %v298, %v303
    %v306 = vunpack.c.l.s4 1983009808
    %v307 = vunpack.c.0.s8 %v306
    %v308 = vperm.slane %v300, %v307
    %v309 = vrot.slane %v152, 4
    %v310 = vsel %vm297, %v309, %v88
    %v311 = vrot.slane %v88, 4
    %v312 = vsel %vm297, %v152, %v311
    %v314 = vunpack.c.l.s4 1983009808
    %v315 = vunpack.c.0.s8 %v314
    %v316 = vperm.slane %v310, %v315
    %v318 = vunpack.c.l.s4 1983009808
    %v319 = vunpack.c.0.s8 %v318
    %v320 = vperm.slane %v312, %v319
    %v321 = vrot.slane %v316, 4
    %v322 = vsel %vm297, %v321, %v304
    %v323 = vrot.slane %v304, 4
    %v324 = vsel %vm297, %v316, %v323
    %v326 = vunpack.c.l.s4 1934713408
    %v327 = vunpack.c.0.s8 %v326
    %v328 = vperm.slane %v322, %v327
    %v330 = vunpack.c.l.s4 1934713408
    %v331 = vunpack.c.0.s8 %v330
    %v332 = vperm.slane %v324, %v331
    %v333 = vrot.slane %v320, 4
    %v334 = vsel %vm297, %v333, %v308
    %v335 = vrot.slane %v308, 4
    %v336 = vsel %vm297, %v320, %v335
    %v338 = vunpack.c.l.s4 1934713408
    %v339 = vunpack.c.0.s8 %v338
    %v340 = vperm.slane %v334, %v339
    %v342 = vunpack.c.l.s4 1934713408
    %v343 = vunpack.c.0.s8 %v342
    %v344 = vperm.slane %v336, %v343
    %v345 = vrot.slane %v328, 4
    %v346 = vsel %vm297, 0.0, %v345
    %v347 = vrot.slane %v332, 4
    %v348 = vsel %vm297, 0.0, %v347
    %v349 = vrot.slane %v340, 4
    %v350 = vsel %vm297, 0.0, %v349
    %v351 = vrot.slane %v344, 4
    %v352 = vsel %vm297, 0.0, %v351
    %v353 = vrot.slane %v121, 4
    %v354 = vsel %vm297, %v353, %v57
    %v355 = vrot.slane %v57, 4
    %v356 = vsel %vm297, %v121, %v355
    %v358 = vunpack.c.l.s4 1983009808
    %v359 = vunpack.c.0.s8 %v358
    %v360 = vperm.slane %v354, %v359
    %v362 = vunpack.c.l.s4 1983009808
    %v363 = vunpack.c.0.s8 %v362
    %v364 = vperm.slane %v356, %v363
    %v365 = vrot.slane %v153, 4
    %v366 = vsel %vm297, %v365, %v89
    %v367 = vrot.slane %v89, 4
    %v368 = vsel %vm297, %v153, %v367
    %v370 = vunpack.c.l.s4 1983009808
    %v371 = vunpack.c.0.s8 %v370
    %v372 = vperm.slane %v366, %v371
    %v374 = vunpack.c.l.s4 1983009808
    %v375 = vunpack.c.0.s8 %v374
    %v376 = vperm.slane %v368, %v375
    %v377 = vrot.slane %v372, 4
    %v378 = vsel %vm297, %v377, %v360
    %v379 = vrot.slane %v360, 4
    %v380 = vsel %vm297, %v372, %v379
    %v382 = vunpack.c.l.s4 1934713408
    %v383 = vunpack.c.0.s8 %v382
    %v384 = vperm.slane %v378, %v383
    %v386 = vunpack.c.l.s4 1934713408
    %v387 = vunpack.c.0.s8 %v386
    %v388 = vperm.slane %v380, %v387
    %v389 = vrot.slane %v376, 4
    %v390 = vsel %vm297, %v389, %v364
    %v391 = vrot.slane %v364, 4
    %v392 = vsel %vm297, %v376, %v391
    %v394 = vunpack.c.l.s4 1934713408
    %v395 = vunpack.c.0.s8 %v394
    %v396 = vperm.slane %v390, %v395
    %v398 = vunpack.c.l.s4 1934713408
    %v399 = vunpack.c.0.s8 %v398
    %v400 = vperm.slane %v392, %v399
    %v401 = vrot.slane %v384, 4
    %v402 = vsel %vm297, 0.0, %v401
    %v403 = vrot.slane %v388, 4
    %v404 = vsel %vm297, 0.0, %v403
    %v405 = vrot.slane %v396, 4
    %v406 = vsel %vm297, 0.0, %v405
    %v407 = vrot.slane %v400, 4
    %v408 = vsel %vm297, 0.0, %v407
    %v409 = vrot.slane %v248, 4
    %v410 = vsel %vm297, %v409, %v184
    %v411 = vrot.slane %v184, 4
    %v412 = vsel %vm297, %v248, %v411
    %v414 = vunpack.c.l.s4 1983009808
    %v415 = vunpack.c.0.s8 %v414
    %v416 = vperm.slane %v410, %v415
    %v418 = vunpack.c.l.s4 1983009808
    %v419 = vunpack.c.0.s8 %v418
    %v420 = vperm.slane %v412, %v419
    %v421 = vrot.slane %v280, 4
    %v422 = vsel %vm297, %v421, %v216
    %v423 = vrot.slane %v216, 4
    %v424 = vsel %vm297, %v280, %v423
    %v426 = vunpack.c.l.s4 1983009808
    %v427 = vunpack.c.0.s8 %v426
    %v428 = vperm.slane %v422, %v427
    %v430 = vunpack.c.l.s4 1983009808
    %v431 = vunpack.c.0.s8 %v430
    %v432 = vperm.slane %v424, %v431
    %v433 = vrot.slane %v428, 4
    %v434 = vsel %vm297, %v433, %v416
    %v435 = vrot.slane %v416, 4
    %v436 = vsel %vm297, %v428, %v435
    %v438 = vunpack.c.l.s4 1934713408
    %v439 = vunpack.c.0.s8 %v438
    %v440 = vperm.slane %v434, %v439
    %v442 = vunpack.c.l.s4 1934713408
    %v443 = vunpack.c.0.s8 %v442
    %v444 = vperm.slane %v436, %v443
    %v445 = vrot.slane %v432, 4
    %v446 = vsel %vm297, %v445, %v420
    %v447 = vrot.slane %v420, 4
    %v448 = vsel %vm297, %v432, %v447
    %v450 = vunpack.c.l.s4 1934713408
    %v451 = vunpack.c.0.s8 %v450
    %v452 = vperm.slane %v446, %v451
    %v454 = vunpack.c.l.s4 1934713408
    %v455 = vunpack.c.0.s8 %v454
    %v456 = vperm.slane %v448, %v455
    %v457 = vrot.slane %v440, 4
    %v458 = vsel %vm297, 0.0, %v457
    %v459 = vrot.slane %v444, 4
    %v460 = vsel %vm297, 0.0, %v459
    %v461 = vrot.slane %v452, 4
    %v462 = vsel %vm297, 0.0, %v461
    %v463 = vrot.slane %v456, 4
    %v464 = vsel %vm297, 0.0, %v463
    %v465 = vrot.slane %v249, 4
    %v466 = vsel %vm297, %v465, %v185
    %v467 = vrot.slane %v185, 4
    %v468 = vsel %vm297, %v249, %v467
    %v470 = vunpack.c.l.s4 1983009808
    %v471 = vunpack.c.0.s8 %v470
    %v472 = vperm.slane %v466, %v471
    %v474 = vunpack.c.l.s4 1983009808
    %v475 = vunpack.c.0.s8 %v474
    %v476 = vperm.slane %v468, %v475
    %v477 = vrot.slane %v281, 4
    %v478 = vsel %vm297, %v477, %v217
    %v479 = vrot.slane %v217, 4
    %v480 = vsel %vm297, %v281, %v479
    %v482 = vunpack.c.l.s4 1983009808
    %v483 = vunpack.c.0.s8 %v482
    %v484 = vperm.slane %v478, %v483
    %v486 = vunpack.c.l.s4 1983009808
    %v487 = vunpack.c.0.s8 %v486
    %v488 = vperm.slane %v480, %v487
    %v489 = vrot.slane %v484, 4
    %v490 = vsel %vm297, %v489, %v472
    %v491 = vrot.slane %v472, 4
    %v492 = vsel %vm297, %v484, %v491
    %v494 = vunpack.c.l.s4 1934713408
    %v495 = vunpack.c.0.s8 %v494
    %v496 = vperm.slane %v490, %v495
    %v498 = vunpack.c.l.s4 1934713408
    %v499 = vunpack.c.0.s8 %v498
    %v500 = vperm.slane %v492, %v499
    %v501 = vrot.slane %v488, 4
    %v502 = vsel %vm297, %v501, %v476
    %v503 = vrot.slane %v476, 4
    %v504 = vsel %vm297, %v488, %v503
    %v506 = vunpack.c.l.s4 1934713408
    %v507 = vunpack.c.0.s8 %v506
    %v508 = vperm.slane %v502, %v507
    %v510 = vunpack.c.l.s4 1934713408
    %v511 = vunpack.c.0.s8 %v510
    %v512 = vperm.slane %v504, %v511
    %v513 = vrot.slane %v496, 4
    %v514 = vsel %vm297, 0.0, %v513
    %v515 = vrot.slane %v500, 4
    %v516 = vsel %vm297, 0.0, %v515
    %v517 = vrot.slane %v508, 4
    %v518 = vsel %vm297, 0.0, %v517
    %v519 = vrot.slane %v512, 4
    %v520 = vsel %vm297, 0.0, %v519
    %521 = vxpose.xlu0.b32.start [1/16] %v328, 128
    %522 = vxpose.xlu0.b32.cont [2/16] 0.0, 128
    %523 = vxpose.xlu0.b32.cont [3/16] 0.0, 128
    %524 = vxpose.xlu0.b32.cont [4/16] 0.0, 128
    %525 = vxpose.xlu0.b32.cont [5/16] 0.0, 128
    %526 = vxpose.xlu0.b32.cont [6/16] 0.0, 128
    %527 = vxpose.xlu0.b32.cont [7/16] 0.0, 128
    %528 = vxpose.xlu0.b32.cont [8/16] 0.0, 128
    %529 = vxpose.xlu0.b32.cont [9/16] 0.0, 128
    %530 = vxpose.xlu0.b32.cont [10/16] 0.0, 128
    %531 = vxpose.xlu0.b32.cont [11/16] 0.0, 128
    %532 = vxpose.xlu0.b32.cont [12/16] 0.0, 128
    %533 = vxpose.xlu0.b32.cont [13/16] 0.0, 128
    %534 = vxpose.xlu0.b32.cont [14/16] 0.0, 128
    %535 = vxpose.xlu0.b32.cont [15/16] 0.0, 128
    %536 = vxpose.xlu0.b32.end [16/16] 0.0, 128
    %v537 = vpop.trf.xlu0
    %v538 = vpop.trf.xlu0
    %v539 = vpop.trf.xlu0
    %v540 = vpop.trf.xlu0
    %v541 = vpop.trf.xlu0
    %v542 = vpop.trf.xlu0
    %v543 = vpop.trf.xlu0
    %v544 = vpop.trf.xlu0
    %v545 = vpop.trf.xlu0
    %v546 = vpop.trf.xlu0
    %v547 = vpop.trf.xlu0
    %v548 = vpop.trf.xlu0
    %v549 = vpop.trf.xlu0
    %v550 = vpop.trf.xlu0
    %v551 = vpop.trf.xlu0
    %v552 = vpop.trf.xlu0
    %553 = vxpose.xlu0.b32.start [1/16] %v346, 128
    %554 = vxpose.xlu0.b32.cont [2/16] 0.0, 128
    %555 = vxpose.xlu0.b32.cont [3/16] 0.0, 128
    %556 = vxpose.xlu0.b32.cont [4/16] 0.0, 128
    %557 = vxpose.xlu0.b32.cont [5/16] 0.0, 128
    %558 = vxpose.xlu0.b32.cont [6/16] 0.0, 128
    %559 = vxpose.xlu0.b32.cont [7/16] 0.0, 128
    %560 = vxpose.xlu0.b32.cont [8/16] 0.0, 128
    %561 = vxpose.xlu0.b32.cont [9/16] 0.0, 128
    %562 = vxpose.xlu0.b32.cont [10/16] 0.0, 128
    %563 = vxpose.xlu0.b32.cont [11/16] 0.0, 128
    %564 = vxpose.xlu0.b32.cont [12/16] 0.0, 128
    %565 = vxpose.xlu0.b32.cont [13/16] 0.0, 128
    %566 = vxpose.xlu0.b32.cont [14/16] 0.0, 128
    %567 = vxpose.xlu0.b32.cont [15/16] 0.0, 128
    %568 = vxpose.xlu0.b32.end [16/16] 0.0, 128
    %v569 = vpop.trf.xlu0
    %v570 = vpop.trf.xlu0
    %v571 = vpop.trf.xlu0
    %v572 = vpop.trf.xlu0
    %v573 = vpop.trf.xlu0
    %v574 = vpop.trf.xlu0
    %v575 = vpop.trf.xlu0
    %v576 = vpop.trf.xlu0
    %v577 = vpop.trf.xlu0
    %v578 = vpop.trf.xlu0
    %v579 = vpop.trf.xlu0
    %v580 = vpop.trf.xlu0
    %v581 = vpop.trf.xlu0
    %v582 = vpop.trf.xlu0
    %v583 = vpop.trf.xlu0
    %v584 = vpop.trf.xlu0
    %585 = vxpose.xlu0.b32.start [1/16] %v332, 128
    %586 = vxpose.xlu0.b32.cont [2/16] 0.0, 128
    %587 = vxpose.xlu0.b32.cont [3/16] 0.0, 128
    %588 = vxpose.xlu0.b32.cont [4/16] 0.0, 128
    %589 = vxpose.xlu0.b32.cont [5/16] 0.0, 128
    %590 = vxpose.xlu0.b32.cont [6/16] 0.0, 128
    %591 = vxpose.xlu0.b32.cont [7/16] 0.0, 128
    %592 = vxpose.xlu0.b32.cont [8/16] 0.0, 128
    %593 = vxpose.xlu0.b32.cont [9/16] 0.0, 128
    %594 = vxpose.xlu0.b32.cont [10/16] 0.0, 128
    %595 = vxpose.xlu0.b32.cont [11/16] 0.0, 128
    %596 = vxpose.xlu0.b32.cont [12/16] 0.0, 128
    %597 = vxpose.xlu0.b32.cont [13/16] 0.0, 128
    %598 = vxpose.xlu0.b32.cont [14/16] 0.0, 128
    %599 = vxpose.xlu0.b32.cont [15/16] 0.0, 128
    %600 = vxpose.xlu0.b32.end [16/16] 0.0, 128
    %v601 = vpop.trf.xlu0
    %v602 = vpop.trf.xlu0
    %v603 = vpop.trf.xlu0
    %v604 = vpop.trf.xlu0
    %v605 = vpop.trf.xlu0
    %v606 = vpop.trf.xlu0
    %v607 = vpop.trf.xlu0
    %v608 = vpop.trf.xlu0
    %v609 = vpop.trf.xlu0
    %v610 = vpop.trf.xlu0
    %v611 = vpop.trf.xlu0
    %v612 = vpop.trf.xlu0
    %v613 = vpop.trf.xlu0
    %v614 = vpop.trf.xlu0
    %v615 = vpop.trf.xlu0
    %v616 = vpop.trf.xlu0
    %617 = vxpose.xlu0.b32.start [1/16] %v348, 128
    %618 = vxpose.xlu0.b32.cont [2/16] 0.0, 128
    %619 = vxpose.xlu0.b32.cont [3/16] 0.0, 128
    %620 = vxpose.xlu0.b32.cont [4/16] 0.0, 128
    %621 = vxpose.xlu0.b32.cont [5/16] 0.0, 128
    %622 = vxpose.xlu0.b32.cont [6/16] 0.0, 128
    %623 = vxpose.xlu0.b32.cont [7/16] 0.0, 128
    %624 = vxpose.xlu0.b32.cont [8/16] 0.0, 128
    %625 = vxpose.xlu0.b32.cont [9/16] 0.0, 128
    %626 = vxpose.xlu0.b32.cont [10/16] 0.0, 128
    %627 = vxpose.xlu0.b32.cont [11/16] 0.0, 128
    %628 = vxpose.xlu0.b32.cont [12/16] 0.0, 128
    %629 = vxpose.xlu0.b32.cont [13/16] 0.0, 128
    %630 = vxpose.xlu0.b32.cont [14/16] 0.0, 128
    %631 = vxpose.xlu0.b32.cont [15/16] 0.0, 128
    %632 = vxpose.xlu0.b32.end [16/16] 0.0, 128
    %v633 = vpop.trf.xlu0
    %v634 = vpop.trf.xlu0
    %v635 = vpop.trf.xlu0
    %v636 = vpop.trf.xlu0
    %v637 = vpop.trf.xlu0
    %v638 = vpop.trf.xlu0
    %v639 = vpop.trf.xlu0
    %v640 = vpop.trf.xlu0
    %v641 = vpop.trf.xlu0
    %v642 = vpop.trf.xlu0
    %v643 = vpop.trf.xlu0
    %v644 = vpop.trf.xlu0
    %v645 = vpop.trf.xlu0
    %v646 = vpop.trf.xlu0
    %v647 = vpop.trf.xlu0
    %v648 = vpop.trf.xlu0
    %649 = vxpose.xlu0.b32.start [1/16] %v340, 128
    %650 = vxpose.xlu0.b32.cont [2/16] 0.0, 128
    %651 = vxpose.xlu0.b32.cont [3/16] 0.0, 128
    %652 = vxpose.xlu0.b32.cont [4/16] 0.0, 128
    %653 = vxpose.xlu0.b32.cont [5/16] 0.0, 128
    %654 = vxpose.xlu0.b32.cont [6/16] 0.0, 128
    %655 = vxpose.xlu0.b32.cont [7/16] 0.0, 128
    %656 = vxpose.xlu0.b32.cont [8/16] 0.0, 128
    %657 = vxpose.xlu0.b32.cont [9/16] 0.0, 128
    %658 = vxpose.xlu0.b32.cont [10/16] 0.0, 128
    %659 = vxpose.xlu0.b32.cont [11/16] 0.0, 128
    %660 = vxpose.xlu0.b32.cont [12/16] 0.0, 128
    %661 = vxpose.xlu0.b32.cont [13/16] 0.0, 128
    %662 = vxpose.xlu0.b32.cont [14/16] 0.0, 128
    %663 = vxpose.xlu0.b32.cont [15/16] 0.0, 128
    %664 = vxpose.xlu0.b32.end [16/16] 0.0, 128
    %v665 = vpop.trf.xlu0
    %v666 = vpop.trf.xlu0
    %v667 = vpop.trf.xlu0
    %v668 = vpop.trf.xlu0
    %v669 = vpop.trf.xlu0
    %v670 = vpop.trf.xlu0
    %v671 = vpop.trf.xlu0
    %v672 = vpop.trf.xlu0
    %v673 = vpop.trf.xlu0
    %v674 = vpop.trf.xlu0
    %v675 = vpop.trf.xlu0
    %v676 = vpop.trf.xlu0
    %v677 = vpop.trf.xlu0
    %v678 = vpop.trf.xlu0
    %v679 = vpop.trf.xlu0
    %v680 = vpop.trf.xlu0
    %681 = vxpose.xlu0.b32.start [1/16] %v350, 128
    %682 = vxpose.xlu0.b32.cont [2/16] 0.0, 128
    %683 = vxpose.xlu0.b32.cont [3/16] 0.0, 128
    %684 = vxpose.xlu0.b32.cont [4/16] 0.0, 128
    %685 = vxpose.xlu0.b32.cont [5/16] 0.0, 128
    %686 = vxpose.xlu0.b32.cont [6/16] 0.0, 128
    %687 = vxpose.xlu0.b32.cont [7/16] 0.0, 128
    %688 = vxpose.xlu0.b32.cont [8/16] 0.0, 128
    %689 = vxpose.xlu0.b32.cont [9/16] 0.0, 128
    %690 = vxpose.xlu0.b32.cont [10/16] 0.0, 128
    %691 = vxpose.xlu0.b32.cont [11/16] 0.0, 128
    %692 = vxpose.xlu0.b32.cont [12/16] 0.0, 128
    %693 = vxpose.xlu0.b32.cont [13/16] 0.0, 128
    %694 = vxpose.xlu0.b32.cont [14/16] 0.0, 128
    %695 = vxpose.xlu0.b32.cont [15/16] 0.0, 128
    %696 = vxpose.xlu0.b32.end [16/16] 0.0, 128
    %v697 = vpop.trf.xlu0
    %v698 = vpop.trf.xlu0
    %v699 = vpop.trf.xlu0
    %v700 = vpop.trf.xlu0
    %v701 = vpop.trf.xlu0
    %v702 = vpop.trf.xlu0
    %v703 = vpop.trf.xlu0
    %v704 = vpop.trf.xlu0
    %v705 = vpop.trf.xlu0
    %v706 = vpop.trf.xlu0
    %v707 = vpop.trf.xlu0
    %v708 = vpop.trf.xlu0
    %v709 = vpop.trf.xlu0
    %v710 = vpop.trf.xlu0
    %v711 = vpop.trf.xlu0
    %v712 = vpop.trf.xlu0
    %713 = vxpose.xlu0.b32.start [1/16] %v344, 128
    %714 = vxpose.xlu0.b32.cont [2/16] 0.0, 128
    %715 = vxpose.xlu0.b32.cont [3/16] 0.0, 128
    %716 = vxpose.xlu0.b32.cont [4/16] 0.0, 128
    %717 = vxpose.xlu0.b32.cont [5/16] 0.0, 128
    %718 = vxpose.xlu0.b32.cont [6/16] 0.0, 128
    %719 = vxpose.xlu0.b32.cont [7/16] 0.0, 128
    %720 = vxpose.xlu0.b32.cont [8/16] 0.0, 128
    %721 = vxpose.xlu0.b32.cont [9/16] 0.0, 128
    %722 = vxpose.xlu0.b32.cont [10/16] 0.0, 128
    %723 = vxpose.xlu0.b32.cont [11/16] 0.0, 128
    %724 = vxpose.xlu0.b32.cont [12/16] 0.0, 128
    %725 = vxpose.xlu0.b32.cont [13/16] 0.0, 128
    %726 = vxpose.xlu0.b32.cont [14/16] 0.0, 128
    %727 = vxpose.xlu0.b32.cont [15/16] 0.0, 128
    %728 = vxpose.xlu0.b32.end [16/16] 0.0, 128
    %v729 = vpop.trf.xlu0
    %v730 = vpop.trf.xlu0
    %v731 = vpop.trf.xlu0
    %v732 = vpop.trf.xlu0
    %v733 = vpop.trf.xlu0
    %v734 = vpop.trf.xlu0
    %v735 = vpop.trf.xlu0
    %v736 = vpop.trf.xlu0
    %v737 = vpop.trf.xlu0
    %v738 = vpop.trf.xlu0
    %v739 = vpop.trf.xlu0
    %v740 = vpop.trf.xlu0
    %v741 = vpop.trf.xlu0
    %v742 = vpop.trf.xlu0
    %v743 = vpop.trf.xlu0
    %v744 = vpop.trf.xlu0
    %745 = vxpose.xlu0.b32.start [1/16] %v352, 128
    %746 = vxpose.xlu0.b32.cont [2/16] 0.0, 128
    %747 = vxpose.xlu0.b32.cont [3/16] 0.0, 128
    %748 = vxpose.xlu0.b32.cont [4/16] 0.0, 128
    %749 = vxpose.xlu0.b32.cont [5/16] 0.0, 128
    %750 = vxpose.xlu0.b32.cont [6/16] 0.0, 128
    %751 = vxpose.xlu0.b32.cont [7/16] 0.0, 128
    %752 = vxpose.xlu0.b32.cont [8/16] 0.0, 128
    %753 = vxpose.xlu0.b32.cont [9/16] 0.0, 128
    %754 = vxpose.xlu0.b32.cont [10/16] 0.0, 128
    %755 = vxpose.xlu0.b32.cont [11/16] 0.0, 128
    %756 = vxpose.xlu0.b32.cont [12/16] 0.0, 128
    %757 = vxpose.xlu0.b32.cont [13/16] 0.0, 128
    %758 = vxpose.xlu0.b32.cont [14/16] 0.0, 128
    %759 = vxpose.xlu0.b32.cont [15/16] 0.0, 128
    %760 = vxpose.xlu0.b32.end [16/16] 0.0, 128
    %v761 = vpop.trf.xlu0
    %v762 = vpop.trf.xlu0
    %v763 = vpop.trf.xlu0
    %v764 = vpop.trf.xlu0
    %v765 = vpop.trf.xlu0
    %v766 = vpop.trf.xlu0
    %v767 = vpop.trf.xlu0
    %v768 = vpop.trf.xlu0
    %v769 = vpop.trf.xlu0
    %v770 = vpop.trf.xlu0
    %v771 = vpop.trf.xlu0
    %v772 = vpop.trf.xlu0
    %v773 = vpop.trf.xlu0
    %v774 = vpop.trf.xlu0
    %v775 = vpop.trf.xlu0
    %v776 = vpop.trf.xlu0
    %777 = vxpose.xlu0.b32.start [1/16] %v384, 128
    %778 = vxpose.xlu0.b32.cont [2/16] 0.0, 128
    %779 = vxpose.xlu0.b32.cont [3/16] 0.0, 128
    %780 = vxpose.xlu0.b32.cont [4/16] 0.0, 128
    %781 = vxpose.xlu0.b32.cont [5/16] 0.0, 128
    %782 = vxpose.xlu0.b32.cont [6/16] 0.0, 128
    %783 = vxpose.xlu0.b32.cont [7/16] 0.0, 128
    %784 = vxpose.xlu0.b32.cont [8/16] 0.0, 128
    %785 = vxpose.xlu0.b32.cont [9/16] 0.0, 128
    %786 = vxpose.xlu0.b32.cont [10/16] 0.0, 128
    %787 = vxpose.xlu0.b32.cont [11/16] 0.0, 128
    %788 = vxpose.xlu0.b32.cont [12/16] 0.0, 128
    %789 = vxpose.xlu0.b32.cont [13/16] 0.0, 128
    %790 = vxpose.xlu0.b32.cont [14/16] 0.0, 128
    %791 = vxpose.xlu0.b32.cont [15/16] 0.0, 128
    %792 = vxpose.xlu0.b32.end [16/16] 0.0, 128
    %v793 = vpop.trf.xlu0
    %v794 = vpop.trf.xlu0
    %v795 = vpop.trf.xlu0
    %v796 = vpop.trf.xlu0
    %v797 = vpop.trf.xlu0
    %v798 = vpop.trf.xlu0
    %v799 = vpop.trf.xlu0
    %v800 = vpop.trf.xlu0
    %v801 = vpop.trf.xlu0
    %v802 = vpop.trf.xlu0
    %v803 = vpop.trf.xlu0
    %v804 = vpop.trf.xlu0
    %v805 = vpop.trf.xlu0
    %v806 = vpop.trf.xlu0
    %v807 = vpop.trf.xlu0
    %v808 = vpop.trf.xlu0
    %809 = vxpose.xlu0.b32.start [1/16] %v402, 128
    %810 = vxpose.xlu0.b32.cont [2/16] 0.0, 128
    %811 = vxpose.xlu0.b32.cont [3/16] 0.0, 128
    %812 = vxpose.xlu0.b32.cont [4/16] 0.0, 128
    %813 = vxpose.xlu0.b32.cont [5/16] 0.0, 128
    %814 = vxpose.xlu0.b32.cont [6/16] 0.0, 128
    %815 = vxpose.xlu0.b32.cont [7/16] 0.0, 128
    %816 = vxpose.xlu0.b32.cont [8/16] 0.0, 128
    %817 = vxpose.xlu0.b32.cont [9/16] 0.0, 128
    %818 = vxpose.xlu0.b32.cont [10/16] 0.0, 128
    %819 = vxpose.xlu0.b32.cont [11/16] 0.0, 128
    %820 = vxpose.xlu0.b32.cont [12/16] 0.0, 128
    %821 = vxpose.xlu0.b32.cont [13/16] 0.0, 128
    %822 = vxpose.xlu0.b32.cont [14/16] 0.0, 128
    %823 = vxpose.xlu0.b32.cont [15/16] 0.0, 128
    %824 = vxpose.xlu0.b32.end [16/16] 0.0, 128
    %v825 = vpop.trf.xlu0
    %v826 = vpop.trf.xlu0
    %v827 = vpop.trf.xlu0
    %v828 = vpop.trf.xlu0
    %v829 = vpop.trf.xlu0
    %v830 = vpop.trf.xlu0
    %v831 = vpop.trf.xlu0
    %v832 = vpop.trf.xlu0
    %v833 = vpop.trf.xlu0
    %v834 = vpop.trf.xlu0
    %v835 = vpop.trf.xlu0
    %v836 = vpop.trf.xlu0
    %v837 = vpop.trf.xlu0
    %v838 = vpop.trf.xlu0
    %v839 = vpop.trf.xlu0
    %v840 = vpop.trf.xlu0
    %841 = vxpose.xlu0.b32.start [1/16] %v388, 128
    %842 = vxpose.xlu0.b32.cont [2/16] 0.0, 128
    %843 = vxpose.xlu0.b32.cont [3/16] 0.0, 128
    %844 = vxpose.xlu0.b32.cont [4/16] 0.0, 128
    %845 = vxpose.xlu0.b32.cont [5/16] 0.0, 128
    %846 = vxpose.xlu0.b32.cont [6/16] 0.0, 128
    %847 = vxpose.xlu0.b32.cont [7/16] 0.0, 128
    %848 = vxpose.xlu0.b32.cont [8/16] 0.0, 128
    %849 = vxpose.xlu0.b32.cont [9/16] 0.0, 128
    %850 = vxpose.xlu0.b32.cont [10/16] 0.0, 128
    %851 = vxpose.xlu0.b32.cont [11/16] 0.0, 128
    %852 = vxpose.xlu0.b32.cont [12/16] 0.0, 128
    %853 = vxpose.xlu0.b32.cont [13/16] 0.0, 128
    %854 = vxpose.xlu0.b32.cont [14/16] 0.0, 128
    %855 = vxpose.xlu0.b32.cont [15/16] 0.0, 128
    %856 = vxpose.xlu0.b32.end [16/16] 0.0, 128
    %v857 = vpop.trf.xlu0
    %v858 = vpop.trf.xlu0
    %v859 = vpop.trf.xlu0
    %v860 = vpop.trf.xlu0
    %v861 = vpop.trf.xlu0
    %v862 = vpop.trf.xlu0
    %v863 = vpop.trf.xlu0
    %v864 = vpop.trf.xlu0
    %v865 = vpop.trf.xlu0
    %v866 = vpop.trf.xlu0
    %v867 = vpop.trf.xlu0
    %v868 = vpop.trf.xlu0
    %v869 = vpop.trf.xlu0
    %v870 = vpop.trf.xlu0
    %v871 = vpop.trf.xlu0
    %v872 = vpop.trf.xlu0
    %873 = vxpose.xlu0.b32.start [1/16] %v404, 128
    %874 = vxpose.xlu0.b32.cont [2/16] 0.0, 128
    %875 = vxpose.xlu0.b32.cont [3/16] 0.0, 128
    %876 = vxpose.xlu0.b32.cont [4/16] 0.0, 128
    %877 = vxpose.xlu0.b32.cont [5/16] 0.0, 128
    %878 = vxpose.xlu0.b32.cont [6/16] 0.0, 128
    %879 = vxpose.xlu0.b32.cont [7/16] 0.0, 128
    %880 = vxpose.xlu0.b32.cont [8/16] 0.0, 128
    %881 = vxpose.xlu0.b32.cont [9/16] 0.0, 128
    %882 = vxpose.xlu0.b32.cont [10/16] 0.0, 128
    %883 = vxpose.xlu0.b32.cont [11/16] 0.0, 128
    %884 = vxpose.xlu0.b32.cont [12/16] 0.0, 128
    %885 = vxpose.xlu0.b32.cont [13/16] 0.0, 128
    %886 = vxpose.xlu0.b32.cont [14/16] 0.0, 128
    %887 = vxpose.xlu0.b32.cont [15/16] 0.0, 128
    %888 = vxpose.xlu0.b32.end [16/16] 0.0, 128
    %v889 = vpop.trf.xlu0
    %v890 = vpop.trf.xlu0
    %v891 = vpop.trf.xlu0
    %v892 = vpop.trf.xlu0
    %v893 = vpop.trf.xlu0
    %v894 = vpop.trf.xlu0
    %v895 = vpop.trf.xlu0
    %v896 = vpop.trf.xlu0
    %v897 = vpop.trf.xlu0
    %v898 = vpop.trf.xlu0
    %v899 = vpop.trf.xlu0
    %v900 = vpop.trf.xlu0
    %v901 = vpop.trf.xlu0
    %v902 = vpop.trf.xlu0
    %v903 = vpop.trf.xlu0
    %v904 = vpop.trf.xlu0
    %905 = vxpose.xlu0.b32.start [1/16] %v396, 128
    %906 = vxpose.xlu0.b32.cont [2/16] 0.0, 128
    %907 = vxpose.xlu0.b32.cont [3/16] 0.0, 128
    %908 = vxpose.xlu0.b32.cont [4/16] 0.0, 128
    %909 = vxpose.xlu0.b32.cont [5/16] 0.0, 128
    %910 = vxpose.xlu0.b32.cont [6/16] 0.0, 128
    %911 = vxpose.xlu0.b32.cont [7/16] 0.0, 128
    %912 = vxpose.xlu0.b32.cont [8/16] 0.0, 128
    %913 = vxpose.xlu0.b32.cont [9/16] 0.0, 128
    %914 = vxpose.xlu0.b32.cont [10/16] 0.0, 128
    %915 = vxpose.xlu0.b32.cont [11/16] 0.0, 128
    %916 = vxpose.xlu0.b32.cont [12/16] 0.0, 128
    %917 = vxpose.xlu0.b32.cont [13/16] 0.0, 128
    %918 = vxpose.xlu0.b32.cont [14/16] 0.0, 128
    %919 = vxpose.xlu0.b32.cont [15/16] 0.0, 128
    %920 = vxpose.xlu0.b32.end [16/16] 0.0, 128
    %v921 = vpop.trf.xlu0
    %v922 = vpop.trf.xlu0
    %v923 = vpop.trf.xlu0
    %v924 = vpop.trf.xlu0
    %v925 = vpop.trf.xlu0
    %v926 = vpop.trf.xlu0
    %v927 = vpop.trf.xlu0
    %v928 = vpop.trf.xlu0
    %v929 = vpop.trf.xlu0
    %v930 = vpop.trf.xlu0
    %v931 = vpop.trf.xlu0
    %v932 = vpop.trf.xlu0
    %v933 = vpop.trf.xlu0
    %v934 = vpop.trf.xlu0
    %v935 = vpop.trf.xlu0
    %v936 = vpop.trf.xlu0
    %937 = vxpose.xlu0.b32.start [1/16] %v406, 128
    %938 = vxpose.xlu0.b32.cont [2/16] 0.0, 128
    %939 = vxpose.xlu0.b32.cont [3/16] 0.0, 128
    %940 = vxpose.xlu0.b32.cont [4/16] 0.0, 128
    %941 = vxpose.xlu0.b32.cont [5/16] 0.0, 128
    %942 = vxpose.xlu0.b32.cont [6/16] 0.0, 128
    %943 = vxpose.xlu0.b32.cont [7/16] 0.0, 128
    %944 = vxpose.xlu0.b32.cont [8/16] 0.0, 128
    %945 = vxpose.xlu0.b32.cont [9/16] 0.0, 128
    %946 = vxpose.xlu0.b32.cont [10/16] 0.0, 128
    %947 = vxpose.xlu0.b32.cont [11/16] 0.0, 128
    %948 = vxpose.xlu0.b32.cont [12/16] 0.0, 128
    %949 = vxpose.xlu0.b32.cont [13/16] 0.0, 128
    %950 = vxpose.xlu0.b32.cont [14/16] 0.0, 128
    %951 = vxpose.xlu0.b32.cont [15/16] 0.0, 128
    %952 = vxpose.xlu0.b32.end [16/16] 0.0, 128
    %v953 = vpop.trf.xlu0
    %v954 = vpop.trf.xlu0
    %v955 = vpop.trf.xlu0
    %v956 = vpop.trf.xlu0
    %v957 = vpop.trf.xlu0
    %v958 = vpop.trf.xlu0
    %v959 = vpop.trf.xlu0
    %v960 = vpop.trf.xlu0
    %v961 = vpop.trf.xlu0
    %v962 = vpop.trf.xlu0
    %v963 = vpop.trf.xlu0
    %v964 = vpop.trf.xlu0
    %v965 = vpop.trf.xlu0
    %v966 = vpop.trf.xlu0
    %v967 = vpop.trf.xlu0
    %v968 = vpop.trf.xlu0
    %969 = vxpose.xlu0.b32.start [1/16] %v400, 128
    %970 = vxpose.xlu0.b32.cont [2/16] 0.0, 128
    %971 = vxpose.xlu0.b32.cont [3/16] 0.0, 128
    %972 = vxpose.xlu0.b32.cont [4/16] 0.0, 128
    %973 = vxpose.xlu0.b32.cont [5/16] 0.0, 128
    %974 = vxpose.xlu0.b32.cont [6/16] 0.0, 128
    %975 = vxpose.xlu0.b32.cont [7/16] 0.0, 128
    %976 = vxpose.xlu0.b32.cont [8/16] 0.0, 128
    %977 = vxpose.xlu0.b32.cont [9/16] 0.0, 128
    %978 = vxpose.xlu0.b32.cont [10/16] 0.0, 128
    %979 = vxpose.xlu0.b32.cont [11/16] 0.0, 128
    %980 = vxpose.xlu0.b32.cont [12/16] 0.0, 128
    %981 = vxpose.xlu0.b32.cont [13/16] 0.0, 128
    %982 = vxpose.xlu0.b32.cont [14/16] 0.0, 128
    %983 = vxpose.xlu0.b32.cont [15/16] 0.0, 128
    %984 = vxpose.xlu0.b32.end [16/16] 0.0, 128
    %v985 = vpop.trf.xlu0
    %v986 = vpop.trf.xlu0
    %v987 = vpop.trf.xlu0
    %v988 = vpop.trf.xlu0
    %v989 = vpop.trf.xlu0
    %v990 = vpop.trf.xlu0
    %v991 = vpop.trf.xlu0
    %v992 = vpop.trf.xlu0
    %v993 = vpop.trf.xlu0
    %v994 = vpop.trf.xlu0
    %v995 = vpop.trf.xlu0
    %v996 = vpop.trf.xlu0
    %v997 = vpop.trf.xlu0
    %v998 = vpop.trf.xlu0
    %v999 = vpop.trf.xlu0
    %v1000 = vpop.trf.xlu0
    %1001 = vxpose.xlu0.b32.start [1/16] %v408, 128
    %1002 = vxpose.xlu0.b32.cont [2/16] 0.0, 128
    %1003 = vxpose.xlu0.b32.cont [3/16] 0.0, 128
    %1004 = vxpose.xlu0.b32.cont [4/16] 0.0, 128
    %1005 = vxpose.xlu0.b32.cont [5/16] 0.0, 128
    %1006 = vxpose.xlu0.b32.cont [6/16] 0.0, 128
    %1007 = vxpose.xlu0.b32.cont [7/16] 0.0, 128
    %1008 = vxpose.xlu0.b32.cont [8/16] 0.0, 128
    %1009 = vxpose.xlu0.b32.cont [9/16] 0.0, 128
    %1010 = vxpose.xlu0.b32.cont [10/16] 0.0, 128
    %1011 = vxpose.xlu0.b32.cont [11/16] 0.0, 128
    %1012 = vxpose.xlu0.b32.cont [12/16] 0.0, 128
    %1013 = vxpose.xlu0.b32.cont [13/16] 0.0, 128
    %1014 = vxpose.xlu0.b32.cont [14/16] 0.0, 128
    %1015 = vxpose.xlu0.b32.cont [15/16] 0.0, 128
    %1016 = vxpose.xlu0.b32.end [16/16] 0.0, 128
    %v1017 = vpop.trf.xlu0
    %v1018 = vpop.trf.xlu0
    %v1019 = vpop.trf.xlu0
    %v1020 = vpop.trf.xlu0
    %v1021 = vpop.trf.xlu0
    %v1022 = vpop.trf.xlu0
    %v1023 = vpop.trf.xlu0
    %v1024 = vpop.trf.xlu0
    %v1025 = vpop.trf.xlu0
    %v1026 = vpop.trf.xlu0
    %v1027 = vpop.trf.xlu0
    %v1028 = vpop.trf.xlu0
    %v1029 = vpop.trf.xlu0
    %v1030 = vpop.trf.xlu0
    %v1031 = vpop.trf.xlu0
    %v1032 = vpop.trf.xlu0
    %1033 = vxpose.xlu0.b32.start [1/16] %v440, 128
    %1034 = vxpose.xlu0.b32.cont [2/16] 0.0, 128
    %1035 = vxpose.xlu0.b32.cont [3/16] 0.0, 128
    %1036 = vxpose.xlu0.b32.cont [4/16] 0.0, 128
    %1037 = vxpose.xlu0.b32.cont [5/16] 0.0, 128
    %1038 = vxpose.xlu0.b32.cont [6/16] 0.0, 128
    %1039 = vxpose.xlu0.b32.cont [7/16] 0.0, 128
    %1040 = vxpose.xlu0.b32.cont [8/16] 0.0, 128
    %1041 = vxpose.xlu0.b32.cont [9/16] 0.0, 128
    %1042 = vxpose.xlu0.b32.cont [10/16] 0.0, 128
    %1043 = vxpose.xlu0.b32.cont [11/16] 0.0, 128
    %1044 = vxpose.xlu0.b32.cont [12/16] 0.0, 128
    %1045 = vxpose.xlu0.b32.cont [13/16] 0.0, 128
    %1046 = vxpose.xlu0.b32.cont [14/16] 0.0, 128
    %1047 = vxpose.xlu0.b32.cont [15/16] 0.0, 128
    %1048 = vxpose.xlu0.b32.end [16/16] 0.0, 128
    %v1049 = vpop.trf.xlu0
    %v1050 = vpop.trf.xlu0
    %v1051 = vpop.trf.xlu0
    %v1052 = vpop.trf.xlu0
    %v1053 = vpop.trf.xlu0
    %v1054 = vpop.trf.xlu0
    %v1055 = vpop.trf.xlu0
    %v1056 = vpop.trf.xlu0
    %v1057 = vpop.trf.xlu0
    %v1058 = vpop.trf.xlu0
    %v1059 = vpop.trf.xlu0
    %v1060 = vpop.trf.xlu0
    %v1061 = vpop.trf.xlu0
    %v1062 = vpop.trf.xlu0
    %v1063 = vpop.trf.xlu0
    %v1064 = vpop.trf.xlu0
    %1065 = vxpose.xlu0.b32.start [1/16] %v458, 128
    %1066 = vxpose.xlu0.b32.cont [2/16] 0.0, 128
    %1067 = vxpose.xlu0.b32.cont [3/16] 0.0, 128
    %1068 = vxpose.xlu0.b32.cont [4/16] 0.0, 128
    %1069 = vxpose.xlu0.b32.cont [5/16] 0.0, 128
    %1070 = vxpose.xlu0.b32.cont [6/16] 0.0, 128
    %1071 = vxpose.xlu0.b32.cont [7/16] 0.0, 128
    %1072 = vxpose.xlu0.b32.cont [8/16] 0.0, 128
    %1073 = vxpose.xlu0.b32.cont [9/16] 0.0, 128
    %1074 = vxpose.xlu0.b32.cont [10/16] 0.0, 128
    %1075 = vxpose.xlu0.b32.cont [11/16] 0.0, 128
    %1076 = vxpose.xlu0.b32.cont [12/16] 0.0, 128
    %1077 = vxpose.xlu0.b32.cont [13/16] 0.0, 128
    %1078 = vxpose.xlu0.b32.cont [14/16] 0.0, 128
    %1079 = vxpose.xlu0.b32.cont [15/16] 0.0, 128
    %1080 = vxpose.xlu0.b32.end [16/16] 0.0, 128
    %v1081 = vpop.trf.xlu0
    %v1082 = vpop.trf.xlu0
    %v1083 = vpop.trf.xlu0
    %v1084 = vpop.trf.xlu0
    %v1085 = vpop.trf.xlu0
    %v1086 = vpop.trf.xlu0
    %v1087 = vpop.trf.xlu0
    %v1088 = vpop.trf.xlu0
    %v1089 = vpop.trf.xlu0
    %v1090 = vpop.trf.xlu0
    %v1091 = vpop.trf.xlu0
    %v1092 = vpop.trf.xlu0
    %v1093 = vpop.trf.xlu0
    %v1094 = vpop.trf.xlu0
    %v1095 = vpop.trf.xlu0
    %v1096 = vpop.trf.xlu0
    %1097 = vxpose.xlu0.b32.start [1/16] %v444, 128
    %1098 = vxpose.xlu0.b32.cont [2/16] 0.0, 128
    %1099 = vxpose.xlu0.b32.cont [3/16] 0.0, 128
    %1100 = vxpose.xlu0.b32.cont [4/16] 0.0, 128
    %1101 = vxpose.xlu0.b32.cont [5/16] 0.0, 128
    %1102 = vxpose.xlu0.b32.cont [6/16] 0.0, 128
    %1103 = vxpose.xlu0.b32.cont [7/16] 0.0, 128
    %1104 = vxpose.xlu0.b32.cont [8/16] 0.0, 128
    %1105 = vxpose.xlu0.b32.cont [9/16] 0.0, 128
    %1106 = vxpose.xlu0.b32.cont [10/16] 0.0, 128
    %1107 = vxpose.xlu0.b32.cont [11/16] 0.0, 128
    %1108 = vxpose.xlu0.b32.cont [12/16] 0.0, 128
    %1109 = vxpose.xlu0.b32.cont [13/16] 0.0, 128
    %1110 = vxpose.xlu0.b32.cont [14/16] 0.0, 128
    %1111 = vxpose.xlu0.b32.cont [15/16] 0.0, 128
    %1112 = vxpose.xlu0.b32.end [16/16] 0.0, 128
    %v1113 = vpop.trf.xlu0
    %v1114 = vpop.trf.xlu0
    %v1115 = vpop.trf.xlu0
    %v1116 = vpop.trf.xlu0
    %v1117 = vpop.trf.xlu0
    %v1118 = vpop.trf.xlu0
    %v1119 = vpop.trf.xlu0
    %v1120 = vpop.trf.xlu0
    %v1121 = vpop.trf.xlu0
    %v1122 = vpop.trf.xlu0
    %v1123 = vpop.trf.xlu0
    %v1124 = vpop.trf.xlu0
    %v1125 = vpop.trf.xlu0
    %v1126 = vpop.trf.xlu0
    %v1127 = vpop.trf.xlu0
    %v1128 = vpop.trf.xlu0
    %1129 = vxpose.xlu0.b32.start [1/16] %v460, 128
    %1130 = vxpose.xlu0.b32.cont [2/16] 0.0, 128
    %1131 = vxpose.xlu0.b32.cont [3/16] 0.0, 128
    %1132 = vxpose.xlu0.b32.cont [4/16] 0.0, 128
    %1133 = vxpose.xlu0.b32.cont [5/16] 0.0, 128
    %1134 = vxpose.xlu0.b32.cont [6/16] 0.0, 128
    %1135 = vxpose.xlu0.b32.cont [7/16] 0.0, 128
    %1136 = vxpose.xlu0.b32.cont [8/16] 0.0, 128
    %1137 = vxpose.xlu0.b32.cont [9/16] 0.0, 128
    %1138 = vxpose.xlu0.b32.cont [10/16] 0.0, 128
    %1139 = vxpose.xlu0.b32.cont [11/16] 0.0, 128
    %1140 = vxpose.xlu0.b32.cont [12/16] 0.0, 128
    %1141 = vxpose.xlu0.b32.cont [13/16] 0.0, 128
    %1142 = vxpose.xlu0.b32.cont [14/16] 0.0, 128
    %1143 = vxpose.xlu0.b32.cont [15/16] 0.0, 128
    %1144 = vxpose.xlu0.b32.end [16/16] 0.0, 128
    %v1145 = vpop.trf.xlu0
    %v1146 = vpop.trf.xlu0
    %v1147 = vpop.trf.xlu0
    %v1148 = vpop.trf.xlu0
    %v1149 = vpop.trf.xlu0
    %v1150 = vpop.trf.xlu0
    %v1151 = vpop.trf.xlu0
    %v1152 = vpop.trf.xlu0
    %v1153 = vpop.trf.xlu0
    %v1154 = vpop.trf.xlu0
    %v1155 = vpop.trf.xlu0
    %v1156 = vpop.trf.xlu0
    %v1157 = vpop.trf.xlu0
    %v1158 = vpop.trf.xlu0
    %v1159 = vpop.trf.xlu0
    %v1160 = vpop.trf.xlu0
    %1161 = vxpose.xlu0.b32.start [1/16] %v452, 128
    %1162 = vxpose.xlu0.b32.cont [2/16] 0.0, 128
    %1163 = vxpose.xlu0.b32.cont [3/16] 0.0, 128
    %1164 = vxpose.xlu0.b32.cont [4/16] 0.0, 128
    %1165 = vxpose.xlu0.b32.cont [5/16] 0.0, 128
    %1166 = vxpose.xlu0.b32.cont [6/16] 0.0, 128
    %1167 = vxpose.xlu0.b32.cont [7/16] 0.0, 128
    %1168 = vxpose.xlu0.b32.cont [8/16] 0.0, 128
    %1169 = vxpose.xlu0.b32.cont [9/16] 0.0, 128
    %1170 = vxpose.xlu0.b32.cont [10/16] 0.0, 128
    %1171 = vxpose.xlu0.b32.cont [11/16] 0.0, 128
    %1172 = vxpose.xlu0.b32.cont [12/16] 0.0, 128
    %1173 = vxpose.xlu0.b32.cont [13/16] 0.0, 128
    %1174 = vxpose.xlu0.b32.cont [14/16] 0.0, 128
    %1175 = vxpose.xlu0.b32.cont [15/16] 0.0, 128
    %1176 = vxpose.xlu0.b32.end [16/16] 0.0, 128
    %v1177 = vpop.trf.xlu0
    %v1178 = vpop.trf.xlu0
    %v1179 = vpop.trf.xlu0
    %v1180 = vpop.trf.xlu0
    %v1181 = vpop.trf.xlu0
    %v1182 = vpop.trf.xlu0
    %v1183 = vpop.trf.xlu0
    %v1184 = vpop.trf.xlu0
    %v1185 = vpop.trf.xlu0
    %v1186 = vpop.trf.xlu0
    %v1187 = vpop.trf.xlu0
    %v1188 = vpop.trf.xlu0
    %v1189 = vpop.trf.xlu0
    %v1190 = vpop.trf.xlu0
    %v1191 = vpop.trf.xlu0
    %v1192 = vpop.trf.xlu0
    %1193 = vxpose.xlu0.b32.start [1/16] %v462, 128
    %1194 = vxpose.xlu0.b32.cont [2/16] 0.0, 128
    %1195 = vxpose.xlu0.b32.cont [3/16] 0.0, 128
    %1196 = vxpose.xlu0.b32.cont [4/16] 0.0, 128
    %1197 = vxpose.xlu0.b32.cont [5/16] 0.0, 128
    %1198 = vxpose.xlu0.b32.cont [6/16] 0.0, 128
    %1199 = vxpose.xlu0.b32.cont [7/16] 0.0, 128
    %1200 = vxpose.xlu0.b32.cont [8/16] 0.0, 128
    %1201 = vxpose.xlu0.b32.cont [9/16] 0.0, 128
    %1202 = vxpose.xlu0.b32.cont [10/16] 0.0, 128
    %1203 = vxpose.xlu0.b32.cont [11/16] 0.0, 128
    %1204 = vxpose.xlu0.b32.cont [12/16] 0.0, 128
    %1205 = vxpose.xlu0.b32.cont [13/16] 0.0, 128
    %1206 = vxpose.xlu0.b32.cont [14/16] 0.0, 128
    %1207 = vxpose.xlu0.b32.cont [15/16] 0.0, 128
    %1208 = vxpose.xlu0.b32.end [16/16] 0.0, 128
    %v1209 = vpop.trf.xlu0
    %v1210 = vpop.trf.xlu0
    %v1211 = vpop.trf.xlu0
    %v1212 = vpop.trf.xlu0
    %v1213 = vpop.trf.xlu0
    %v1214 = vpop.trf.xlu0
    %v1215 = vpop.trf.xlu0
    %v1216 = vpop.trf.xlu0
    %v1217 = vpop.trf.xlu0
    %v1218 = vpop.trf.xlu0
    %v1219 = vpop.trf.xlu0
    %v1220 = vpop.trf.xlu0
    %v1221 = vpop.trf.xlu0
    %v1222 = vpop.trf.xlu0
    %v1223 = vpop.trf.xlu0
    %v1224 = vpop.trf.xlu0
    %1225 = vxpose.xlu0.b32.start [1/16] %v456, 128
    %1226 = vxpose.xlu0.b32.cont [2/16] 0.0, 128
    %1227 = vxpose.xlu0.b32.cont [3/16] 0.0, 128
    %1228 = vxpose.xlu0.b32.cont [4/16] 0.0, 128
    %1229 = vxpose.xlu0.b32.cont [5/16] 0.0, 128
    %1230 = vxpose.xlu0.b32.cont [6/16] 0.0, 128
    %1231 = vxpose.xlu0.b32.cont [7/16] 0.0, 128
    %1232 = vxpose.xlu0.b32.cont [8/16] 0.0, 128
    %1233 = vxpose.xlu0.b32.cont [9/16] 0.0, 128
    %1234 = vxpose.xlu0.b32.cont [10/16] 0.0, 128
    %1235 = vxpose.xlu0.b32.cont [11/16] 0.0, 128
    %1236 = vxpose.xlu0.b32.cont [12/16] 0.0, 128
    %1237 = vxpose.xlu0.b32.cont [13/16] 0.0, 128
    %1238 = vxpose.xlu0.b32.cont [14/16] 0.0, 128
    %1239 = vxpose.xlu0.b32.cont [15/16] 0.0, 128
    %1240 = vxpose.xlu0.b32.end [16/16] 0.0, 128
    %v1241 = vpop.trf.xlu0
    %v1242 = vpop.trf.xlu0
    %v1243 = vpop.trf.xlu0
    %v1244 = vpop.trf.xlu0
    %v1245 = vpop.trf.xlu0
    %v1246 = vpop.trf.xlu0
    %v1247 = vpop.trf.xlu0
    %v1248 = vpop.trf.xlu0
    %v1249 = vpop.trf.xlu0
    %v1250 = vpop.trf.xlu0
    %v1251 = vpop.trf.xlu0
    %v1252 = vpop.trf.xlu0
    %v1253 = vpop.trf.xlu0
    %v1254 = vpop.trf.xlu0
    %v1255 = vpop.trf.xlu0
    %v1256 = vpop.trf.xlu0
    %1257 = vxpose.xlu0.b32.start [1/16] %v464, 128
    %1258 = vxpose.xlu0.b32.cont [2/16] 0.0, 128
    %1259 = vxpose.xlu0.b32.cont [3/16] 0.0, 128
    %1260 = vxpose.xlu0.b32.cont [4/16] 0.0, 128
    %1261 = vxpose.xlu0.b32.cont [5/16] 0.0, 128
    %1262 = vxpose.xlu0.b32.cont [6/16] 0.0, 128
    %1263 = vxpose.xlu0.b32.cont [7/16] 0.0, 128
    %1264 = vxpose.xlu0.b32.cont [8/16] 0.0, 128
    %1265 = vxpose.xlu0.b32.cont [9/16] 0.0, 128
    %1266 = vxpose.xlu0.b32.cont [10/16] 0.0, 128
    %1267 = vxpose.xlu0.b32.cont [11/16] 0.0, 128
    %1268 = vxpose.xlu0.b32.cont [12/16] 0.0, 128
    %1269 = vxpose.xlu0.b32.cont [13/16] 0.0, 128
    %1270 = vxpose.xlu0.b32.cont [14/16] 0.0, 128
    %1271 = vxpose.xlu0.b32.cont [15/16] 0.0, 128
    %1272 = vxpose.xlu0.b32.end [16/16] 0.0, 128
    %v1273 = vpop.trf.xlu0
    %v1274 = vpop.trf.xlu0
    %v1275 = vpop.trf.xlu0
    %v1276 = vpop.trf.xlu0
    %v1277 = vpop.trf.xlu0
    %v1278 = vpop.trf.xlu0
    %v1279 = vpop.trf.xlu0
    %v1280 = vpop.trf.xlu0
    %v1281 = vpop.trf.xlu0
    %v1282 = vpop.trf.xlu0
    %v1283 = vpop.trf.xlu0
    %v1284 = vpop.trf.xlu0
    %v1285 = vpop.trf.xlu0
    %v1286 = vpop.trf.xlu0
    %v1287 = vpop.trf.xlu0
    %v1288 = vpop.trf.xlu0
    %1289 = vxpose.xlu0.b32.start [1/16] %v496, 128
    %1290 = vxpose.xlu0.b32.cont [2/16] 0.0, 128
    %1291 = vxpose.xlu0.b32.cont [3/16] 0.0, 128
    %1292 = vxpose.xlu0.b32.cont [4/16] 0.0, 128
    %1293 = vxpose.xlu0.b32.cont [5/16] 0.0, 128
    %1294 = vxpose.xlu0.b32.cont [6/16] 0.0, 128
    %1295 = vxpose.xlu0.b32.cont [7/16] 0.0, 128
    %1296 = vxpose.xlu0.b32.cont [8/16] 0.0, 128
    %1297 = vxpose.xlu0.b32.cont [9/16] 0.0, 128
    %1298 = vxpose.xlu0.b32.cont [10/16] 0.0, 128
    %1299 = vxpose.xlu0.b32.cont [11/16] 0.0, 128
    %1300 = vxpose.xlu0.b32.cont [12/16] 0.0, 128
    %1301 = vxpose.xlu0.b32.cont [13/16] 0.0, 128
    %1302 = vxpose.xlu0.b32.cont [14/16] 0.0, 128
    %1303 = vxpose.xlu0.b32.cont [15/16] 0.0, 128
    %1304 = vxpose.xlu0.b32.end [16/16] 0.0, 128
    %v1305 = vpop.trf.xlu0
    %v1306 = vpop.trf.xlu0
    %v1307 = vpop.trf.xlu0
    %v1308 = vpop.trf.xlu0
    %v1309 = vpop.trf.xlu0
    %v1310 = vpop.trf.xlu0
    %v1311 = vpop.trf.xlu0
    %v1312 = vpop.trf.xlu0
    %v1313 = vpop.trf.xlu0
    %v1314 = vpop.trf.xlu0
    %v1315 = vpop.trf.xlu0
    %v1316 = vpop.trf.xlu0
    %v1317 = vpop.trf.xlu0
    %v1318 = vpop.trf.xlu0
    %v1319 = vpop.trf.xlu0
    %v1320 = vpop.trf.xlu0
    %1321 = vxpose.xlu0.b32.start [1/16] %v514, 128
    %1322 = vxpose.xlu0.b32.cont [2/16] 0.0, 128
    %1323 = vxpose.xlu0.b32.cont [3/16] 0.0, 128
    %1324 = vxpose.xlu0.b32.cont [4/16] 0.0, 128
    %1325 = vxpose.xlu0.b32.cont [5/16] 0.0, 128
    %1326 = vxpose.xlu0.b32.cont [6/16] 0.0, 128
    %1327 = vxpose.xlu0.b32.cont [7/16] 0.0, 128
    %1328 = vxpose.xlu0.b32.cont [8/16] 0.0, 128
    %1329 = vxpose.xlu0.b32.cont [9/16] 0.0, 128
    %1330 = vxpose.xlu0.b32.cont [10/16] 0.0, 128
    %1331 = vxpose.xlu0.b32.cont [11/16] 0.0, 128
    %1332 = vxpose.xlu0.b32.cont [12/16] 0.0, 128
    %1333 = vxpose.xlu0.b32.cont [13/16] 0.0, 128
    %1334 = vxpose.xlu0.b32.cont [14/16] 0.0, 128
    %1335 = vxpose.xlu0.b32.cont [15/16] 0.0, 128
    %1336 = vxpose.xlu0.b32.end [16/16] 0.0, 128
    %v1337 = vpop.trf.xlu0
    %v1338 = vpop.trf.xlu0
    %v1339 = vpop.trf.xlu0
    %v1340 = vpop.trf.xlu0
    %v1341 = vpop.trf.xlu0
    %v1342 = vpop.trf.xlu0
    %v1343 = vpop.trf.xlu0
    %v1344 = vpop.trf.xlu0
    %v1345 = vpop.trf.xlu0
    %v1346 = vpop.trf.xlu0
    %v1347 = vpop.trf.xlu0
    %v1348 = vpop.trf.xlu0
    %v1349 = vpop.trf.xlu0
    %v1350 = vpop.trf.xlu0
    %v1351 = vpop.trf.xlu0
    %v1352 = vpop.trf.xlu0
    %1353 = vxpose.xlu0.b32.start [1/16] %v500, 128
    %1354 = vxpose.xlu0.b32.cont [2/16] 0.0, 128
    %1355 = vxpose.xlu0.b32.cont [3/16] 0.0, 128
    %1356 = vxpose.xlu0.b32.cont [4/16] 0.0, 128
    %1357 = vxpose.xlu0.b32.cont [5/16] 0.0, 128
    %1358 = vxpose.xlu0.b32.cont [6/16] 0.0, 128
    %1359 = vxpose.xlu0.b32.cont [7/16] 0.0, 128
    %1360 = vxpose.xlu0.b32.cont [8/16] 0.0, 128
    %1361 = vxpose.xlu0.b32.cont [9/16] 0.0, 128
    %1362 = vxpose.xlu0.b32.cont [10/16] 0.0, 128
    %1363 = vxpose.xlu0.b32.cont [11/16] 0.0, 128
    %1364 = vxpose.xlu0.b32.cont [12/16] 0.0, 128
    %1365 = vxpose.xlu0.b32.cont [13/16] 0.0, 128
    %1366 = vxpose.xlu0.b32.cont [14/16] 0.0, 128
    %1367 = vxpose.xlu0.b32.cont [15/16] 0.0, 128
    %1368 = vxpose.xlu0.b32.end [16/16] 0.0, 128
    %v1369 = vpop.trf.xlu0
    %v1370 = vpop.trf.xlu0
    %v1371 = vpop.trf.xlu0
    %v1372 = vpop.trf.xlu0
    %v1373 = vpop.trf.xlu0
    %v1374 = vpop.trf.xlu0
    %v1375 = vpop.trf.xlu0
    %v1376 = vpop.trf.xlu0
    %v1377 = vpop.trf.xlu0
    %v1378 = vpop.trf.xlu0
    %v1379 = vpop.trf.xlu0
    %v1380 = vpop.trf.xlu0
    %v1381 = vpop.trf.xlu0
    %v1382 = vpop.trf.xlu0
    %v1383 = vpop.trf.xlu0
    %v1384 = vpop.trf.xlu0
    %1385 = vxpose.xlu0.b32.start [1/16] %v516, 128
    %1386 = vxpose.xlu0.b32.cont [2/16] 0.0, 128
    %1387 = vxpose.xlu0.b32.cont [3/16] 0.0, 128
    %1388 = vxpose.xlu0.b32.cont [4/16] 0.0, 128
    %1389 = vxpose.xlu0.b32.cont [5/16] 0.0, 128
    %1390 = vxpose.xlu0.b32.cont [6/16] 0.0, 128
    %1391 = vxpose.xlu0.b32.cont [7/16] 0.0, 128
    %1392 = vxpose.xlu0.b32.cont [8/16] 0.0, 128
    %1393 = vxpose.xlu0.b32.cont [9/16] 0.0, 128
    %1394 = vxpose.xlu0.b32.cont [10/16] 0.0, 128
    %1395 = vxpose.xlu0.b32.cont [11/16] 0.0, 128
    %1396 = vxpose.xlu0.b32.cont [12/16] 0.0, 128
    %1397 = vxpose.xlu0.b32.cont [13/16] 0.0, 128
    %1398 = vxpose.xlu0.b32.cont [14/16] 0.0, 128
    %1399 = vxpose.xlu0.b32.cont [15/16] 0.0, 128
    %1400 = vxpose.xlu0.b32.end [16/16] 0.0, 128
    %v1401 = vpop.trf.xlu0
    %v1402 = vpop.trf.xlu0
    %v1403 = vpop.trf.xlu0
    %v1404 = vpop.trf.xlu0
    %v1405 = vpop.trf.xlu0
    %v1406 = vpop.trf.xlu0
    %v1407 = vpop.trf.xlu0
    %v1408 = vpop.trf.xlu0
    %v1409 = vpop.trf.xlu0
    %v1410 = vpop.trf.xlu0
    %v1411 = vpop.trf.xlu0
    %v1412 = vpop.trf.xlu0
    %v1413 = vpop.trf.xlu0
    %v1414 = vpop.trf.xlu0
    %v1415 = vpop.trf.xlu0
    %v1416 = vpop.trf.xlu0
    %1417 = vxpose.xlu0.b32.start [1/16] %v508, 128
    %1418 = vxpose.xlu0.b32.cont [2/16] 0.0, 128
    %1419 = vxpose.xlu0.b32.cont [3/16] 0.0, 128
    %1420 = vxpose.xlu0.b32.cont [4/16] 0.0, 128
    %1421 = vxpose.xlu0.b32.cont [5/16] 0.0, 128
    %1422 = vxpose.xlu0.b32.cont [6/16] 0.0, 128
    %1423 = vxpose.xlu0.b32.cont [7/16] 0.0, 128
    %1424 = vxpose.xlu0.b32.cont [8/16] 0.0, 128
    %1425 = vxpose.xlu0.b32.cont [9/16] 0.0, 128
    %1426 = vxpose.xlu0.b32.cont [10/16] 0.0, 128
    %1427 = vxpose.xlu0.b32.cont [11/16] 0.0, 128
    %1428 = vxpose.xlu0.b32.cont [12/16] 0.0, 128
    %1429 = vxpose.xlu0.b32.cont [13/16] 0.0, 128
    %1430 = vxpose.xlu0.b32.cont [14/16] 0.0, 128
    %1431 = vxpose.xlu0.b32.cont [15/16] 0.0, 128
    %1432 = vxpose.xlu0.b32.end [16/16] 0.0, 128
    %v1433 = vpop.trf.xlu0
    %v1434 = vpop.trf.xlu0
    %v1435 = vpop.trf.xlu0
    %v1436 = vpop.trf.xlu0
    %v1437 = vpop.trf.xlu0
    %v1438 = vpop.trf.xlu0
    %v1439 = vpop.trf.xlu0
    %v1440 = vpop.trf.xlu0
    %v1441 = vpop.trf.xlu0
    %v1442 = vpop.trf.xlu0
    %v1443 = vpop.trf.xlu0
    %v1444 = vpop.trf.xlu0
    %v1445 = vpop.trf.xlu0
    %v1446 = vpop.trf.xlu0
    %v1447 = vpop.trf.xlu0
    %v1448 = vpop.trf.xlu0
    %1449 = vxpose.xlu0.b32.start [1/16] %v518, 128
    %1450 = vxpose.xlu0.b32.cont [2/16] 0.0, 128
    %1451 = vxpose.xlu0.b32.cont [3/16] 0.0, 128
    %1452 = vxpose.xlu0.b32.cont [4/16] 0.0, 128
    %1453 = vxpose.xlu0.b32.cont [5/16] 0.0, 128
    %1454 = vxpose.xlu0.b32.cont [6/16] 0.0, 128
    %1455 = vxpose.xlu0.b32.cont [7/16] 0.0, 128
    %1456 = vxpose.xlu0.b32.cont [8/16] 0.0, 128
    %1457 = vxpose.xlu0.b32.cont [9/16] 0.0, 128
    %1458 = vxpose.xlu0.b32.cont [10/16] 0.0, 128
    %1459 = vxpose.xlu0.b32.cont [11/16] 0.0, 128
    %1460 = vxpose.xlu0.b32.cont [12/16] 0.0, 128
    %1461 = vxpose.xlu0.b32.cont [13/16] 0.0, 128
    %1462 = vxpose.xlu0.b32.cont [14/16] 0.0, 128
    %1463 = vxpose.xlu0.b32.cont [15/16] 0.0, 128
    %1464 = vxpose.xlu0.b32.end [16/16] 0.0, 128
    %v1465 = vpop.trf.xlu0
    %v1466 = vpop.trf.xlu0
    %v1467 = vpop.trf.xlu0
    %v1468 = vpop.trf.xlu0
    %v1469 = vpop.trf.xlu0
    %v1470 = vpop.trf.xlu0
    %v1471 = vpop.trf.xlu0
    %v1472 = vpop.trf.xlu0
    %v1473 = vpop.trf.xlu0
    %v1474 = vpop.trf.xlu0
    %v1475 = vpop.trf.xlu0
    %v1476 = vpop.trf.xlu0
    %v1477 = vpop.trf.xlu0
    %v1478 = vpop.trf.xlu0
    %v1479 = vpop.trf.xlu0
    %v1480 = vpop.trf.xlu0
    %1481 = vxpose.xlu0.b32.start [1/16] %v512, 128
    %1482 = vxpose.xlu0.b32.cont [2/16] 0.0, 128
    %1483 = vxpose.xlu0.b32.cont [3/16] 0.0, 128
    %1484 = vxpose.xlu0.b32.cont [4/16] 0.0, 128
    %1485 = vxpose.xlu0.b32.cont [5/16] 0.0, 128
    %1486 = vxpose.xlu0.b32.cont [6/16] 0.0, 128
    %1487 = vxpose.xlu0.b32.cont [7/16] 0.0, 128
    %1488 = vxpose.xlu0.b32.cont [8/16] 0.0, 128
    %1489 = vxpose.xlu0.b32.cont [9/16] 0.0, 128
    %1490 = vxpose.xlu0.b32.cont [10/16] 0.0, 128
    %1491 = vxpose.xlu0.b32.cont [11/16] 0.0, 128
    %1492 = vxpose.xlu0.b32.cont [12/16] 0.0, 128
    %1493 = vxpose.xlu0.b32.cont [13/16] 0.0, 128
    %1494 = vxpose.xlu0.b32.cont [14/16] 0.0, 128
    %1495 = vxpose.xlu0.b32.cont [15/16] 0.0, 128
    %1496 = vxpose.xlu0.b32.end [16/16] 0.0, 128
    %v1497 = vpop.trf.xlu0
    %v1498 = vpop.trf.xlu0
    %v1499 = vpop.trf.xlu0
    %v1500 = vpop.trf.xlu0
    %v1501 = vpop.trf.xlu0
    %v1502 = vpop.trf.xlu0
    %v1503 = vpop.trf.xlu0
    %v1504 = vpop.trf.xlu0
    %v1505 = vpop.trf.xlu0
    %v1506 = vpop.trf.xlu0
    %v1507 = vpop.trf.xlu0
    %v1508 = vpop.trf.xlu0
    %v1509 = vpop.trf.xlu0
    %v1510 = vpop.trf.xlu0
    %v1511 = vpop.trf.xlu0
    %v1512 = vpop.trf.xlu0
    %1513 = vxpose.xlu0.b32.start [1/16] %v520, 128
    %1514 = vxpose.xlu0.b32.cont [2/16] 0.0, 128
    %1515 = vxpose.xlu0.b32.cont [3/16] 0.0, 128
    %1516 = vxpose.xlu0.b32.cont [4/16] 0.0, 128
    %1517 = vxpose.xlu0.b32.cont [5/16] 0.0, 128
    %1518 = vxpose.xlu0.b32.cont [6/16] 0.0, 128
    %1519 = vxpose.xlu0.b32.cont [7/16] 0.0, 128
    %1520 = vxpose.xlu0.b32.cont [8/16] 0.0, 128
    %1521 = vxpose.xlu0.b32.cont [9/16] 0.0, 128
    %1522 = vxpose.xlu0.b32.cont [10/16] 0.0, 128
    %1523 = vxpose.xlu0.b32.cont [11/16] 0.0, 128
    %1524 = vxpose.xlu0.b32.cont [12/16] 0.0, 128
    %1525 = vxpose.xlu0.b32.cont [13/16] 0.0, 128
    %1526 = vxpose.xlu0.b32.cont [14/16] 0.0, 128
    %1527 = vxpose.xlu0.b32.cont [15/16] 0.0, 128
    %1528 = vxpose.xlu0.b32.end [16/16] 0.0, 128
    %v1529 = vpop.trf.xlu0
    %v1530 = vpop.trf.xlu0
    %v1531 = vpop.trf.xlu0
    %v1532 = vpop.trf.xlu0
    %v1533 = vpop.trf.xlu0
    %v1534 = vpop.trf.xlu0
    %v1535 = vpop.trf.xlu0
    %v1536 = vpop.trf.xlu0
    %v1537 = vpop.trf.xlu0
    %v1538 = vpop.trf.xlu0
    %v1539 = vpop.trf.xlu0
    %v1540 = vpop.trf.xlu0
    %v1541 = vpop.trf.xlu0
    %v1542 = vpop.trf.xlu0
    %v1543 = vpop.trf.xlu0
    %v1544 = vpop.trf.xlu0
    %vm1545 = vcmask 31744
    %1546 = vst.msk [vmem:[%s1] sm:$0xff] %vm1545, %v537
    %1547 = vst.msk [vmem:[%s1 + $0x8] sm:$0xff] %vm1545, %v538
    %1548 = vst.msk [vmem:[%s1 + $0x10] sm:$0xff] %vm1545, %v569
    %1549 = vst.msk [vmem:[%s1 + $0x18] sm:$0xff] %vm1545, %v570
    %1550 = vst.msk [vmem:[%s1 + $0x20] sm:$0xff] %vm1545, %v601
    %1551 = vst.msk [vmem:[%s1 + $0x28] sm:$0xff] %vm1545, %v602
    %1552 = vst.msk [vmem:[%s1 + $0x30] sm:$0xff] %vm1545, %v633
    %1553 = vst.msk [vmem:[%s1 + $0x38] sm:$0xff] %vm1545, %v634
    %1554 = vst.msk [vmem:[%s1 + $0x40] sm:$0xff] %vm1545, %v665
    %1555 = vst.msk [vmem:[%s1 + $0x48] sm:$0xff] %vm1545, %v666
    %1556 = vst.msk [vmem:[%s1 + $0x50] sm:$0xff] %vm1545, %v697
    %1557 = vst.msk [vmem:[%s1 + $0x58] sm:$0xff] %vm1545, %v698
    %1558 = vst.msk [vmem:[%s1 + $0x60] sm:$0xff] %vm1545, %v729
    %1559 = vst.msk [vmem:[%s1 + $0x68] sm:$0xff] %vm1545, %v730
    %1560 = vst.msk [vmem:[%s1 + $0x70] sm:$0xff] %vm1545, %v761
    %1561 = vst.msk [vmem:[%s1 + $0x78] sm:$0xff] %vm1545, %v762
    %1562 = vst.msk [vmem:[%s1 + $0x80] sm:$0xff] %vm1545, %v793
    %1563 = vst.msk [vmem:[%s1 + $0x88] sm:$0xff] %vm1545, %v794
    %1564 = vst.msk [vmem:[%s1 + $0x90] sm:$0xff] %vm1545, %v825
    %1565 = vst.msk [vmem:[%s1 + $0x98] sm:$0xff] %vm1545, %v826
    %1566 = vst.msk [vmem:[%s1 + $0xa0] sm:$0xff] %vm1545, %v857
    %1567 = vst.msk [vmem:[%s1 + $0xa8] sm:$0xff] %vm1545, %v858
    %1568 = vst.msk [vmem:[%s1 + $0xb0] sm:$0xff] %vm1545, %v889
    %1569 = vst.msk [vmem:[%s1 + $0xb8] sm:$0xff] %vm1545, %v890
    %1570 = vst.msk [vmem:[%s1 + $0xc0] sm:$0xff] %vm1545, %v921
    %1571 = vst.msk [vmem:[%s1 + $0xc8] sm:$0xff] %vm1545, %v922
    %1572 = vst.msk [vmem:[%s1 + $0xd0] sm:$0xff] %vm1545, %v953
    %1573 = vst.msk [vmem:[%s1 + $0xd8] sm:$0xff] %vm1545, %v954
    %1574 = vst.msk [vmem:[%s1 + $0xe0] sm:$0xff] %vm1545, %v985
    %1575 = vst.msk [vmem:[%s1 + $0xe8] sm:$0xff] %vm1545, %v986
    %1576 = vst.msk [vmem:[%s1 + $0xf0] sm:$0xff] %vm1545, %v1017
    %1577 = vst.msk [vmem:[%s1 + $0xf8] sm:$0xff] %vm1545, %v1018
    %1578 = vst.msk [vmem:[%s1 + $0x100] sm:$0xff] %vm1545, %v1049
    %1579 = vst.msk [vmem:[%s1 + $0x108] sm:$0xff] %vm1545, %v1050
    %1580 = vst.msk [vmem:[%s1 + $0x110] sm:$0xff] %vm1545, %v1081
    %1581 = vst.msk [vmem:[%s1 + $0x118] sm:$0xff] %vm1545, %v1082
    %1582 = vst.msk [vmem:[%s1 + $0x120] sm:$0xff] %vm1545, %v1113
    %1583 = vst.msk [vmem:[%s1 + $0x128] sm:$0xff] %vm1545, %v1114
    %1584 = vst.msk [vmem:[%s1 + $0x130] sm:$0xff] %vm1545, %v1145
    %1585 = vst.msk [vmem:[%s1 + $0x138] sm:$0xff] %vm1545, %v1146
    %1586 = vst.msk [vmem:[%s1 + $0x140] sm:$0xff] %vm1545, %v1177
    %1587 = vst.msk [vmem:[%s1 + $0x148] sm:$0xff] %vm1545, %v1178
    %1588 = vst.msk [vmem:[%s1 + $0x150] sm:$0xff] %vm1545, %v1209
    %1589 = vst.msk [vmem:[%s1 + $0x158] sm:$0xff] %vm1545, %v1210
    %1590 = vst.msk [vmem:[%s1 + $0x160] sm:$0xff] %vm1545, %v1241
    %1591 = vst.msk [vmem:[%s1 + $0x168] sm:$0xff] %vm1545, %v1242
    %1592 = vst.msk [vmem:[%s1 + $0x170] sm:$0xff] %vm1545, %v1273
    %1593 = vst.msk [vmem:[%s1 + $0x178] sm:$0xff] %vm1545, %v1274
    %1594 = vst.msk [vmem:[%s1 + $0x180] sm:$0xff] %vm1545, %v1305
    %1595 = vst.msk [vmem:[%s1 + $0x188] sm:$0xff] %vm1545, %v1306
    %1596 = vst.msk [vmem:[%s1 + $0x190] sm:$0xff] %vm1545, %v1337
    %1597 = vst.msk [vmem:[%s1 + $0x198] sm:$0xff] %vm1545, %v1338
    %1598 = vst.msk [vmem:[%s1 + $0x1a0] sm:$0xff] %vm1545, %v1369
    %1599 = vst.msk [vmem:[%s1 + $0x1a8] sm:$0xff] %vm1545, %v1370
    %1600 = vst.msk [vmem:[%s1 + $0x1b0] sm:$0xff] %vm1545, %v1401
    %1601 = vst.msk [vmem:[%s1 + $0x1b8] sm:$0xff] %vm1545, %v1402
    %1602 = vst.msk [vmem:[%s1 + $0x1c0] sm:$0xff] %vm1545, %v1433
    %1603 = vst.msk [vmem:[%s1 + $0x1c8] sm:$0xff] %vm1545, %v1434
    %1604 = vst.msk [vmem:[%s1 + $0x1d0] sm:$0xff] %vm1545, %v1465
    %1605 = vst.msk [vmem:[%s1 + $0x1d8] sm:$0xff] %vm1545, %v1466
    %1606 = vst.msk [vmem:[%s1 + $0x1e0] sm:$0xff] %vm1545, %v1497
    %1607 = vst.msk [vmem:[%s1 + $0x1e8] sm:$0xff] %vm1545, %v1498
    %1608 = vst.msk [vmem:[%s1 + $0x1f0] sm:$0xff] %vm1545, %v1529
    %1609 = vst.msk [vmem:[%s1 + $0x1f8] sm:$0xff] %vm1545, %v1530
    // Predicated region
    $region10: #{_tc_forward_basic.1} parent=1 // pred_check
      _
    $region11: #{_tc_forward_basic.1} parent=1 // pred_check_branch
      %1611 = sbr.rel (0) target = $region13
    $region12: #{_tc_forward_basic.1} parent=1 // pred_region
      _
    $region13: #{_tc_forward_basic.1} parent=1 // pred_fallthru
      _
    // Predicated region
    $region14: #{_tc_forward_basic.1} parent=1 // pred_check
      _
    $region15: #{_tc_forward_basic.1} parent=1 // pred_check_branch
      %1613 = sbr.rel (0) target = $region17
    $region16: #{_tc_forward_basic.1} parent=1 // pred_region
      _
    $region17: #{_tc_forward_basic.1} parent=1 // pred_fallthru
      _
    %1614 = vsyncpa [#allocation3], 1

</llo_original>
